<compile_context>
chip_gen: v6e
topology: v6e:2x2x1
jax: 0.10.0
libtpu: 0.0.40
codegen_flags: <defaults>
</compile_context>

<pallas_src>
import functools

import jax
import jax.numpy as jnp
from jax.experimental import pallas as pl
from jax.experimental.pallas import tpu as pltpu


def _softplus(x):
    # Matches torch.nn.functional.softplus (beta=1, threshold=20); only uses
    # exp/log/min/where so it lowers cleanly in Mosaic.  The same function is
    # used by the pure-JAX reference so kernel vs. ref stays consistent.
    return jnp.where(x > 20.0, x, jnp.log(1.0 + jnp.exp(jnp.minimum(x, 20.0))))


# --------------------------------------------------------------------------
# Fused projection + selective-scan kernel
# --------------------------------------------------------------------------
def _s6_kernel(x_ref, wdT_ref, wdtT_ref, bdt_ref, wb_ref, wcT_ref, aT_ref,
               dvec_ref, y_ref, h_ref, *, lt):
    # x_ref:    (LT, d)        one time chunk of the input (batch squeezed)
    # wdT_ref:  (d, dt_rank)   x_proj delta rows, transposed
    # wdtT_ref: (dt_rank, d)   dt_proj weight, transposed
    # bdt_ref:  (1, d)         dt_proj bias
    # wb_ref:   (n, d)         x_proj B rows (un-transposed)
    # wcT_ref:  (d, n)         x_proj C rows, transposed
    # aT_ref:   (n, d)         A^T = (-exp(A_log))^T, f32
    # dvec_ref: (1, d)         D, f32
    # y_ref:    (LT, d)        output chunk
    # h_ref:    (n, d) f32     SSM state scratch, carried across time chunks

    # Reset the carried SSM state at the start of every batch element.
    @pl.when(pl.program_id(1) == 0)
    def _():
        h_ref[...] = jnp.zeros_like(h_ref)

    x = x_ref[...].astype(jnp.float32)                       # (LT, d)

    # ---- fused projections (all MXU, all VMEM-resident) -------------------
    dr = jnp.dot(x, wdT_ref[...].astype(jnp.float32),
                 preferred_element_type=jnp.float32)          # (LT, r)
    delta = _softplus(
        jnp.dot(dr, wdtT_ref[...].astype(jnp.float32),
                preferred_element_type=jnp.float32)
        + bdt_ref[...].astype(jnp.float32))                   # (LT, d)
    # B^T (n, LT): contract over d so the per-step column is already (n, 1)
    # and no per-step lane->sublane transposes are needed in the recurrence.
    bT = jax.lax.dot_general(
        wb_ref[...].astype(jnp.float32), x,
        dimension_numbers=(((1,), (1,)), ((), ())),
        preferred_element_type=jnp.float32)                   # (n, LT)
    c = jnp.dot(x, wcT_ref[...].astype(jnp.float32),
                preferred_element_type=jnp.float32)           # (LT, n)

    a_t = aT_ref[...]                                         # (n, d)
    du = delta * x                                            # (LT, d)
    ud = x * dvec_ref[...]                                    # (LT, d)  u * D

    # ---- sequential selective scan ----------------------------------------
    h = h_ref[...]                                            # (n, d) f32
    # Static (unrolled) loop over the time chunk: all slices are static, so no
    # dynamic lane/sublane indexing or relayouts inside the recurrence.
    for t in range(lt):
        dA = jnp.exp(a_t * delta[t:t + 1, :])                 # (n, d)  EUP
        h = dA * h + bT[:, t:t + 1] * du[t:t + 1, :]          # (n, d)  VPU
        # y_t = C_t . h  ->  (1, n) @ (n, d) on the MXU, lane-dense (1, d)
        y_row = jnp.dot(c[t:t + 1, :], h,
                        preferred_element_type=jnp.float32)   # (1, d)
        y_ref[t:t + 1, :] = (y_row + ud[t:t + 1, :]).astype(y_ref.dtype)
    h_ref[...] = h


# --------------------------------------------------------------------------
# Parameter preparation (done once, not per call)
# --------------------------------------------------------------------------
def prepare_s6_params(w_xproj, w_dt, b_dt, A_log, D, *, dt_rank, d_state):
    n = d_state
    w_delta = w_xproj[:dt_rank]                 # (dt_rank, d)
    w_B = w_xproj[dt_rank:dt_rank + n]          # (n, d)
    w_C = w_xproj[dt_rank + n:]                 # (n, d)
    return dict(
        w_delta_t=jnp.asarray(w_delta.T),                          # (d, dt_rank)
        w_dt_t=jnp.asarray(w_dt.T),                                # (dt_rank, d)
        b_dt=jnp.asarray(b_dt).reshape(1, -1),                     # (1, d)
        w_b=jnp.asarray(w_B),                                      # (n, d)
        w_c_t=jnp.asarray(w_C.T),                                  # (d, n)
        a_t=jnp.asarray((-jnp.exp(A_log.astype(jnp.float32))).T),  # (n, d)
        d_vec=jnp.asarray(D.astype(jnp.float32)).reshape(1, -1),   # (1, d)
    )


def _pick_time_tile(l):
    # time_tile sits on the sublane axis of the x / y blocks, so it must be a
    # multiple of 8 or equal to the full sequence length.  Cap at 128 to keep
    # the unrolled in-kernel scan loop a reasonable length.
    for cand in (128, 64, 32, 16, 8):
        if l % cand == 0:
            return cand
    return l


# --------------------------------------------------------------------------
# Forward wrapper
# --------------------------------------------------------------------------
def s6_forward(x, params, *, time_tile=None):
    b, l, d = x.shape
    n = params['a_t'].shape[0]
    dt_rank = params['w_delta_t'].shape[1]

    if time_tile is None:
        time_tile = _pick_time_tile(l)
    assert l % time_tile == 0

    kernel = functools.partial(_s6_kernel, lt=time_tile)

    def const2(bi, ti):
        return (0, 0)

    y = pl.pallas_call(
        kernel,
        out_shape=jax.ShapeDtypeStruct((b, l, d), x.dtype),
        grid_spec=pltpu.PrefetchScalarGridSpec(
            num_scalar_prefetch=0,
            grid=(b, l // time_tile),
            in_specs=[
                pl.BlockSpec((None, time_tile, d), lambda bi, ti: (bi, ti, 0)),
                pl.BlockSpec((d, dt_rank), const2),
                pl.BlockSpec((dt_rank, d), const2),
                pl.BlockSpec((1, d), const2),
                pl.BlockSpec((n, d), const2),
                pl.BlockSpec((d, n), const2),
                pl.BlockSpec((n, d), const2),
                pl.BlockSpec((1, d), const2),
            ],
            out_specs=pl.BlockSpec((None, time_tile, d),
                                   lambda bi, ti: (bi, ti, 0)),
            scratch_shapes=[pltpu.VMEM((n, d), jnp.float32)],
        ),
        compiler_params=pltpu.CompilerParams(
            dimension_semantics=("parallel", "arbitrary")),
    )(x, params['w_delta_t'], params['w_dt_t'], params['b_dt'],
      params['w_b'], params['w_c_t'], params['a_t'], params['d_vec'])

    return y


# --------------------------------------------------------------------------
# Pure-JAX reference (mirrors the PyTorch module)
# --------------------------------------------------------------------------
def s6_ref(x, w_xproj, w_dt, b_dt, A_log, D, *, dt_rank, d_state):
    hp = jax.lax.Precision.HIGHEST
    n = d_state
    A = -jnp.exp(A_log.astype(jnp.float32))
    Dv = D.astype(jnp.float32)
    x_dbl = jnp.einsum('bld,kd->blk', x, w_xproj, precision=hp)
    delta_r = x_dbl[..., :dt_rank]
    B = x_dbl[..., dt_rank:dt_rank + n]
    C = x_dbl[..., dt_rank + n:]
    delta = _softplus(jnp.einsum('blr,dr->bld', delta_r, w_dt, precision=hp)
                      + b_dt)
    deltaA = jnp.exp(jnp.einsum('bld,dn->bldn', delta, A))
    deltaB_u = jnp.einsum('bld,bln,bld->bldn', delta, B, x)
    b_, l_, d_ = x.shape
    h = jnp.zeros((b_, d_, n), jnp.float32)
    ys = []
    for i in range(l_):
        h = deltaA[:, i] * h + deltaB_u[:, i]
        ys.append(jnp.einsum('bdn,bn->bd', h, C[:, i], precision=hp))
    y = jnp.stack(ys, axis=1)
    return y + x * Dv


if __name__ == "__main__":
    # Small shapes consistent with the module (scaled down from the defaults
    # d_model=256, d_state=512, dt_rank=32), keeping d_model lane-aligned.
    B_, L_, Dm, N_, R_ = 2, 8, 128, 64, 32

    key = jax.random.PRNGKey(0)
    k1, k2, k3, k4 = jax.random.split(key, 4)

    x = jax.random.normal(k1, (B_, L_, Dm), dtype=jnp.float32)
    w_xproj = jax.random.normal(k2, (R_ + 2 * N_, Dm), dtype=jnp.float32) \
        / jnp.sqrt(jnp.float32(Dm))
    w_dt = jax.random.normal(k3, (Dm, R_), dtype=jnp.float32) \
        / jnp.sqrt(jnp.float32(R_))
    b_dt = 0.01 * jax.random.normal(k4, (Dm,), dtype=jnp.float32)
    # A_log = log(repeat(arange(1, n+1), 'n -> d n'))
    A_log = jnp.log(jnp.tile(jnp.arange(1, N_ + 1, dtype=jnp.float32)[None, :],
                             (Dm, 1)))
    Dp = jnp.ones((Dm,), dtype=jnp.float32)

    params = prepare_s6_params(w_xproj, w_dt, b_dt, A_log, Dp,
                               dt_rank=R_, d_state=N_)

    out = s6_forward(x, params)
    out = jax.block_until_ready(out)

    ref = s6_ref(x, w_xproj, w_dt, b_dt, A_log, Dp, dt_rank=R_, d_state=N_)
    ref = jax.block_until_ready(ref)

    assert out.shape == (B_, L_, Dm)
    max_err = float(jnp.max(jnp.abs(out - ref)))
    assert jnp.allclose(out, ref, atol=3e-3, rtol=3e-3), max_err

    print("KERNEL_OK")
</pallas_src>

<mosaic_0001>
module attributes {stable_mosaic.version = 11 : i64} {
  func.func @_s6_kernel(%arg0: i32, %arg1: i32, %arg2: memref<1x8x128xf32, #tpu.memory_space<vmem>>, %arg3: memref<128x32xf32, #tpu.memory_space<vmem>>, %arg4: memref<32x128xf32, #tpu.memory_space<vmem>>, %arg5: memref<1x128xf32, #tpu.memory_space<vmem>>, %arg6: memref<64x128xf32, #tpu.memory_space<vmem>>, %arg7: memref<128x64xf32, #tpu.memory_space<vmem>>, %arg8: memref<64x128xf32, #tpu.memory_space<vmem>>, %arg9: memref<1x128xf32, #tpu.memory_space<vmem>>, %arg10: memref<1x8x128xf32, #tpu.memory_space<vmem>>, %arg11: memref<64x128xf32, #tpu.memory_space<vmem>>) attributes {dimension_semantics = [#tpu.dimension_semantics<parallel>, #tpu.dimension_semantics<arbitrary>], iteration_bounds = array<i64: 2, 1>, scalar_prefetch = 0 : i64, scratch_operands = 1 : i64, tpu.core_type = #tpu.core_type<tc>, window_params = [{transform_indices = @transform_0, window_bounds = array<i64: 1, 8, 128>}, {pipeline_mode = #tpu.pipeline_mode<synchronous>, transform_indices = @transform_1, window_bounds = array<i64: 128, 32>}, {pipeline_mode = #tpu.pipeline_mode<synchronous>, transform_indices = @transform_2, window_bounds = array<i64: 32, 128>}, {pipeline_mode = #tpu.pipeline_mode<synchronous>, transform_indices = @transform_3, window_bounds = array<i64: 1, 128>}, {pipeline_mode = #tpu.pipeline_mode<synchronous>, transform_indices = @transform_4, window_bounds = array<i64: 64, 128>}, {pipeline_mode = #tpu.pipeline_mode<synchronous>, transform_indices = @transform_5, window_bounds = array<i64: 128, 64>}, {pipeline_mode = #tpu.pipeline_mode<synchronous>, transform_indices = @transform_6, window_bounds = array<i64: 64, 128>}, {pipeline_mode = #tpu.pipeline_mode<synchronous>, transform_indices = @transform_7, window_bounds = array<i64: 1, 128>}, {transform_indices = @transform_8, window_bounds = array<i64: 1, 8, 128>}]} {
    %c0_i32 = arith.constant 0 : i32
    %0 = arith.cmpi eq, %arg1, %c0_i32 : i32
    %1 = arith.extui %0 : i1 to i32
    %c0_i32_0 = arith.constant 0 : i32
    %2 = arith.cmpi ne, %1, %c0_i32_0 : i32
    scf.if %2 {
      %cst_52 = arith.constant 0.000000e+00 : f32
      %176 = vector.broadcast %cst_52 : f32 to vector<64x128xf32>
      %c0_53 = arith.constant 0 : index
      %c0_54 = arith.constant 0 : index
      %177 = vector.load %arg11[%c0_53, %c0_54] : memref<64x128xf32, #tpu.memory_space<vmem>>, vector<64x128xf32>
      tpu.vector_store %arg11[%c0_53, %c0_54], %176 {strides = array<i32>} : memref<64x128xf32, #tpu.memory_space<vmem>>, vector<64x128xf32>,
    } else {
    }
    %c0 = arith.constant 0 : index
    %c0_1 = arith.constant 0 : index
    %c0_2 = arith.constant 0 : index
    %3 = vector.load %arg2[%c0, %c0_1, %c0_2] : memref<1x8x128xf32, #tpu.memory_space<vmem>>, vector<1x8x128xf32>
    %4 = vector.shape_cast %3 : vector<1x8x128xf32> to vector<8x128xf32>
    %c0_3 = arith.constant 0 : index
    %c0_4 = arith.constant 0 : index
    %5 = vector.load %arg3[%c0_3, %c0_4] : memref<128x32xf32, #tpu.memory_space<vmem>>, vector<128x32xf32>
    %cst = arith.constant dense<0.000000e+00> : vector<8x32xf32>
    %6 = tpu.matmul %4, %5, %cst {dimension_numbers = #tpu.dot_dimension_numbers<[1], [0], [0], [1], [0, 0, 1, 1], [], []>} : vector<8x128xf32>, vector<128x32xf32>, vector<8x32xf32> -> vector<8x32xf32>
    %c0_5 = arith.constant 0 : index
    %c0_6 = arith.constant 0 : index
    %7 = vector.load %arg4[%c0_5, %c0_6] : memref<32x128xf32, #tpu.memory_space<vmem>>, vector<32x128xf32>
    %cst_7 = arith.constant dense<0.000000e+00> : vector<8x128xf32>
    %8 = tpu.matmul %6, %7, %cst_7 {dimension_numbers = #tpu.dot_dimension_numbers<[1], [0], [0], [1], [0, 0, 1, 1], [], []>} : vector<8x32xf32>, vector<32x128xf32>, vector<8x128xf32> -> vector<8x128xf32>
    %c0_8 = arith.constant 0 : index
    %c0_9 = arith.constant 0 : index
    %9 = vector.load %arg5[%c0_8, %c0_9] : memref<1x128xf32, #tpu.memory_space<vmem>>, vector<1x128xf32>
    %10 = vector.broadcast %9 : vector<1x128xf32> to vector<8x128xf32>
    %11 = arith.addf %8, %10 : vector<8x128xf32>
    %cst_10 = arith.constant 2.000000e+01 : f32
    %12 = vector.broadcast %cst_10 : f32 to vector<8x128xf32>
    %13 = arith.cmpf ogt, %11, %12 : vector<8x128xf32>
    %cst_11 = arith.constant 2.000000e+01 : f32
    %14 = vector.broadcast %cst_11 : f32 to vector<8x128xf32>
    %15 = arith.minimumf %11, %14 : vector<8x128xf32>
    %16 = math.exp %15 : vector<8x128xf32>
    %cst_12 = arith.constant 1.000000e+00 : f32
    %17 = vector.broadcast %cst_12 : f32 to vector<8x128xf32>
    %18 = arith.addf %17, %16 : vector<8x128xf32>
    %19 = math.log %18 : vector<8x128xf32>
    %20 = arith.select %13, %11, %19 : vector<8x128xi1>, vector<8x128xf32>
    %c0_13 = arith.constant 0 : index
    %c0_14 = arith.constant 0 : index
    %21 = vector.load %arg6[%c0_13, %c0_14] : memref<64x128xf32, #tpu.memory_space<vmem>>, vector<64x128xf32>
    %cst_15 = arith.constant dense<0.000000e+00> : vector<64x8xf32>
    %22 = tpu.matmul %21, %4, %cst_15 {dimension_numbers = #tpu.dot_dimension_numbers<[1], [1], [0], [0], [0, 0, 1, 0], [], []>} : vector<64x128xf32>, vector<8x128xf32>, vector<64x8xf32> -> vector<64x8xf32>
    %c0_16 = arith.constant 0 : index
    %c0_17 = arith.constant 0 : index
    %23 = vector.load %arg7[%c0_16, %c0_17] : memref<128x64xf32, #tpu.memory_space<vmem>>, vector<128x64xf32>
    %cst_18 = arith.constant dense<0.000000e+00> : vector<8x64xf32>
    %24 = tpu.matmul %4, %23, %cst_18 {dimension_numbers = #tpu.dot_dimension_numbers<[1], [0], [0], [1], [0, 0, 1, 1], [], []>} : vector<8x128xf32>, vector<128x64xf32>, vector<8x64xf32> -> vector<8x64xf32>
    %c0_19 = arith.constant 0 : index
    %c0_20 = arith.constant 0 : index
    %25 = vector.load %arg8[%c0_19, %c0_20] : memref<64x128xf32, #tpu.memory_space<vmem>>, vector<64x128xf32>
    %26 = arith.mulf %20, %4 : vector<8x128xf32>
    %c0_21 = arith.constant 0 : index
    %c0_22 = arith.constant 0 : index
    %27 = vector.load %arg9[%c0_21, %c0_22] : memref<1x128xf32, #tpu.memory_space<vmem>>, vector<1x128xf32>
    %28 = vector.broadcast %27 : vector<1x128xf32> to vector<8x128xf32>
    %29 = arith.mulf %4, %28 : vector<8x128xf32>
    %c0_23 = arith.constant 0 : index
    %c0_24 = arith.constant 0 : index
    %30 = vector.load %arg11[%c0_23, %c0_24] : memref<64x128xf32, #tpu.memory_space<vmem>>, vector<64x128xf32>
    %31 = vector.extract_strided_slice %20 {offsets = [0, 0], sizes = [1, 128], strides = [1, 1]} : vector<8x128xf32> to vector<1x128xf32>
    %32 = vector.broadcast %31 : vector<1x128xf32> to vector<64x128xf32>
    %33 = arith.mulf %25, %32 : vector<64x128xf32>
    %34 = math.exp %33 : vector<64x128xf32>
    %35 = arith.mulf %34, %30 : vector<64x128xf32>
    %36 = vector.extract_strided_slice %22 {offsets = [0, 0], sizes = [64, 1], strides = [1, 1]} : vector<64x8xf32> to vector<64x1xf32>
    %37 = vector.extract_strided_slice %26 {offsets = [0, 0], sizes = [1, 128], strides = [1, 1]} : vector<8x128xf32> to vector<1x128xf32>
    %38 = vector.broadcast %36 : vector<64x1xf32> to vector<64x128xf32>
    %39 = vector.broadcast %37 : vector<1x128xf32> to vector<64x128xf32>
    %40 = arith.mulf %38, %39 : vector<64x128xf32>
    %41 = arith.addf %35, %40 : vector<64x128xf32>
    %42 = vector.extract_strided_slice %24 {offsets = [0, 0], sizes = [1, 64], strides = [1, 1]} : vector<8x64xf32> to vector<1x64xf32>
    %cst_25 = arith.constant dense<0.000000e+00> : vector<1x128xf32>
    %43 = tpu.matmul %42, %41, %cst_25 {dimension_numbers = #tpu.dot_dimension_numbers<[1], [0], [0], [1], [0, 0, 1, 1], [], []>} : vector<1x64xf32>, vector<64x128xf32>, vector<1x128xf32> -> vector<1x128xf32>
    %44 = vector.extract_strided_slice %29 {offsets = [0, 0], sizes = [1, 128], strides = [1, 1]} : vector<8x128xf32> to vector<1x128xf32>
    %45 = arith.addf %43, %44 : vector<1x128xf32>
    %c0_26 = arith.constant 0 : index
    %c0_27 = arith.constant 0 : index
    %c0_28 = arith.constant 0 : index
    %46 = vector.load %arg10[%c0_26, %c0_27, %c0_28] : memref<1x8x128xf32, #tpu.memory_space<vmem>>, vector<1x1x128xf32>
    %47 = vector.shape_cast %46 : vector<1x1x128xf32> to vector<1x128xf32>
    %48 = vector.shape_cast %45 : vector<1x128xf32> to vector<1x1x128xf32>
    tpu.vector_store %arg10[%c0_26, %c0_27, %c0_28], %48 {strides = array<i32>} : memref<1x8x128xf32, #tpu.memory_space<vmem>>, vector<1x1x128xf32>,
    %49 = vector.extract_strided_slice %20 {offsets = [1, 0], sizes = [1, 128], strides = [1, 1]} : vector<8x128xf32> to vector<1x128xf32>
    %50 = vector.broadcast %49 : vector<1x128xf32> to vector<64x128xf32>
    %51 = arith.mulf %25, %50 : vector<64x128xf32>
    %52 = math.exp %51 : vector<64x128xf32>
    %53 = arith.mulf %52, %41 : vector<64x128xf32>
    %54 = vector.extract_strided_slice %22 {offsets = [0, 1], sizes = [64, 1], strides = [1, 1]} : vector<64x8xf32> to vector<64x1xf32>
    %55 = vector.extract_strided_slice %26 {offsets = [1, 0], sizes = [1, 128], strides = [1, 1]} : vector<8x128xf32> to vector<1x128xf32>
    %56 = vector.broadcast %54 : vector<64x1xf32> to vector<64x128xf32>
    %57 = vector.broadcast %55 : vector<1x128xf32> to vector<64x128xf32>
    %58 = arith.mulf %56, %57 : vector<64x128xf32>
    %59 = arith.addf %53, %58 : vector<64x128xf32>
    %60 = vector.extract_strided_slice %24 {offsets = [1, 0], sizes = [1, 64], strides = [1, 1]} : vector<8x64xf32> to vector<1x64xf32>
    %cst_29 = arith.constant dense<0.000000e+00> : vector<1x128xf32>
    %61 = tpu.matmul %60, %59, %cst_29 {dimension_numbers = #tpu.dot_dimension_numbers<[1], [0], [0], [1], [0, 0, 1, 1], [], []>} : vector<1x64xf32>, vector<64x128xf32>, vector<1x128xf32> -> vector<1x128xf32>
    %62 = vector.extract_strided_slice %29 {offsets = [1, 0], sizes = [1, 128], strides = [1, 1]} : vector<8x128xf32> to vector<1x128xf32>
    %63 = arith.addf %61, %62 : vector<1x128xf32>
    %c0_30 = arith.constant 0 : index
    %c1 = arith.constant 1 : index
    %c0_31 = arith.constant 0 : index
    %64 = vector.load %arg10[%c0_30, %c1, %c0_31] : memref<1x8x128xf32, #tpu.memory_space<vmem>>, vector<1x1x128xf32>
    %65 = vector.shape_cast %64 : vector<1x1x128xf32> to vector<1x128xf32>
    %66 = vector.shape_cast %63 : vector<1x128xf32> to vector<1x1x128xf32>
    tpu.vector_store %arg10[%c0_30, %c1, %c0_31], %66 {strides = array<i32>} : memref<1x8x128xf32, #tpu.memory_space<vmem>>, vector<1x1x128xf32>,
    %67 = vector.extract_strided_slice %20 {offsets = [2, 0], sizes = [1, 128], strides = [1, 1]} : vector<8x128xf32> to vector<1x128xf32>
    %68 = vector.broadcast %67 : vector<1x128xf32> to vector<64x128xf32>
    %69 = arith.mulf %25, %68 : vector<64x128xf32>
    %70 = math.exp %69 : vector<64x128xf32>
    %71 = arith.mulf %70, %59 : vector<64x128xf32>
    %72 = vector.extract_strided_slice %22 {offsets = [0, 2], sizes = [64, 1], strides = [1, 1]} : vector<64x8xf32> to vector<64x1xf32>
    %73 = vector.extract_strided_slice %26 {offsets = [2, 0], sizes = [1, 128], strides = [1, 1]} : vector<8x128xf32> to vector<1x128xf32>
    %74 = vector.broadcast %72 : vector<64x1xf32> to vector<64x128xf32>
    %75 = vector.broadcast %73 : vector<1x128xf32> to vector<64x128xf32>
    %76 = arith.mulf %74, %75 : vector<64x128xf32>
    %77 = arith.addf %71, %76 : vector<64x128xf32>
    %78 = vector.extract_strided_slice %24 {offsets = [2, 0], sizes = [1, 64], strides = [1, 1]} : vector<8x64xf32> to vector<1x64xf32>
    %cst_32 = arith.constant dense<0.000000e+00> : vector<1x128xf32>
    %79 = tpu.matmul %78, %77, %cst_32 {dimension_numbers = #tpu.dot_dimension_numbers<[1], [0], [0], [1], [0, 0, 1, 1], [], []>} : vector<1x64xf32>, vector<64x128xf32>, vector<1x128xf32> -> vector<1x128xf32>
    %80 = vector.extract_strided_slice %29 {offsets = [2, 0], sizes = [1, 128], strides = [1, 1]} : vector<8x128xf32> to vector<1x128xf32>
    %81 = arith.addf %79, %80 : vector<1x128xf32>
    %c0_33 = arith.constant 0 : index
    %c2 = arith.constant 2 : index
    %c0_34 = arith.constant 0 : index
    %82 = vector.load %arg10[%c0_33, %c2, %c0_34] : memref<1x8x128xf32, #tpu.memory_space<vmem>>, vector<1x1x128xf32>
    %83 = vector.shape_cast %82 : vector<1x1x128xf32> to vector<1x128xf32>
    %84 = vector.shape_cast %81 : vector<1x128xf32> to vector<1x1x128xf32>
    tpu.vector_store %arg10[%c0_33, %c2, %c0_34], %84 {strides = array<i32>} : memref<1x8x128xf32, #tpu.memory_space<vmem>>, vector<1x1x128xf32>,
    %85 = vector.extract_strided_slice %20 {offsets = [3, 0], sizes = [1, 128], strides = [1, 1]} : vector<8x128xf32> to vector<1x128xf32>
    %86 = vector.broadcast %85 : vector<1x128xf32> to vector<64x128xf32>
    %87 = arith.mulf %25, %86 : vector<64x128xf32>
    %88 = math.exp %87 : vector<64x128xf32>
    %89 = arith.mulf %88, %77 : vector<64x128xf32>
    %90 = vector.extract_strided_slice %22 {offsets = [0, 3], sizes = [64, 1], strides = [1, 1]} : vector<64x8xf32> to vector<64x1xf32>
    %91 = vector.extract_strided_slice %26 {offsets = [3, 0], sizes = [1, 128], strides = [1, 1]} : vector<8x128xf32> to vector<1x128xf32>
    %92 = vector.broadcast %90 : vector<64x1xf32> to vector<64x128xf32>
    %93 = vector.broadcast %91 : vector<1x128xf32> to vector<64x128xf32>
    %94 = arith.mulf %92, %93 : vector<64x128xf32>
    %95 = arith.addf %89, %94 : vector<64x128xf32>
    %96 = vector.extract_strided_slice %24 {offsets = [3, 0], sizes = [1, 64], strides = [1, 1]} : vector<8x64xf32> to vector<1x64xf32>
    %cst_35 = arith.constant dense<0.000000e+00> : vector<1x128xf32>
    %97 = tpu.matmul %96, %95, %cst_35 {dimension_numbers = #tpu.dot_dimension_numbers<[1], [0], [0], [1], [0, 0, 1, 1], [], []>} : vector<1x64xf32>, vector<64x128xf32>, vector<1x128xf32> -> vector<1x128xf32>
    %98 = vector.extract_strided_slice %29 {offsets = [3, 0], sizes = [1, 128], strides = [1, 1]} : vector<8x128xf32> to vector<1x128xf32>
    %99 = arith.addf %97, %98 : vector<1x128xf32>
    %c0_36 = arith.constant 0 : index
    %c3 = arith.constant 3 : index
    %c0_37 = arith.constant 0 : index
    %100 = vector.load %arg10[%c0_36, %c3, %c0_37] : memref<1x8x128xf32, #tpu.memory_space<vmem>>, vector<1x1x128xf32>
    %101 = vector.shape_cast %100 : vector<1x1x128xf32> to vector<1x128xf32>
    %102 = vector.shape_cast %99 : vector<1x128xf32> to vector<1x1x128xf32>
    tpu.vector_store %arg10[%c0_36, %c3, %c0_37], %102 {strides = array<i32>} : memref<1x8x128xf32, #tpu.memory_space<vmem>>, vector<1x1x128xf32>,
    %103 = vector.extract_strided_slice %20 {offsets = [4, 0], sizes = [1, 128], strides = [1, 1]} : vector<8x128xf32> to vector<1x128xf32>
    %104 = vector.broadcast %103 : vector<1x128xf32> to vector<64x128xf32>
    %105 = arith.mulf %25, %104 : vector<64x128xf32>
    %106 = math.exp %105 : vector<64x128xf32>
    %107 = arith.mulf %106, %95 : vector<64x128xf32>
    %108 = vector.extract_strided_slice %22 {offsets = [0, 4], sizes = [64, 1], strides = [1, 1]} : vector<64x8xf32> to vector<64x1xf32>
    %109 = vector.extract_strided_slice %26 {offsets = [4, 0], sizes = [1, 128], strides = [1, 1]} : vector<8x128xf32> to vector<1x128xf32>
    %110 = vector.broadcast %108 : vector<64x1xf32> to vector<64x128xf32>
    %111 = vector.broadcast %109 : vector<1x128xf32> to vector<64x128xf32>
    %112 = arith.mulf %110, %111 : vector<64x128xf32>
    %113 = arith.addf %107, %112 : vector<64x128xf32>
    %114 = vector.extract_strided_slice %24 {offsets = [4, 0], sizes = [1, 64], strides = [1, 1]} : vector<8x64xf32> to vector<1x64xf32>
    %cst_38 = arith.constant dense<0.000000e+00> : vector<1x128xf32>
    %115 = tpu.matmul %114, %113, %cst_38 {dimension_numbers = #tpu.dot_dimension_numbers<[1], [0], [0], [1], [0, 0, 1, 1], [], []>} : vector<1x64xf32>, vector<64x128xf32>, vector<1x128xf32> -> vector<1x128xf32>
    %116 = vector.extract_strided_slice %29 {offsets = [4, 0], sizes = [1, 128], strides = [1, 1]} : vector<8x128xf32> to vector<1x128xf32>
    %117 = arith.addf %115, %116 : vector<1x128xf32>
    %c0_39 = arith.constant 0 : index
    %c4 = arith.constant 4 : index
    %c0_40 = arith.constant 0 : index
    %118 = vector.load %arg10[%c0_39, %c4, %c0_40] : memref<1x8x128xf32, #tpu.memory_space<vmem>>, vector<1x1x128xf32>
    %119 = vector.shape_cast %118 : vector<1x1x128xf32> to vector<1x128xf32>
    %120 = vector.shape_cast %117 : vector<1x128xf32> to vector<1x1x128xf32>
    tpu.vector_store %arg10[%c0_39, %c4, %c0_40], %120 {strides = array<i32>} : memref<1x8x128xf32, #tpu.memory_space<vmem>>, vector<1x1x128xf32>,
    %121 = vector.extract_strided_slice %20 {offsets = [5, 0], sizes = [1, 128], strides = [1, 1]} : vector<8x128xf32> to vector<1x128xf32>
    %122 = vector.broadcast %121 : vector<1x128xf32> to vector<64x128xf32>
    %123 = arith.mulf %25, %122 : vector<64x128xf32>
    %124 = math.exp %123 : vector<64x128xf32>
    %125 = arith.mulf %124, %113 : vector<64x128xf32>
    %126 = vector.extract_strided_slice %22 {offsets = [0, 5], sizes = [64, 1], strides = [1, 1]} : vector<64x8xf32> to vector<64x1xf32>
    %127 = vector.extract_strided_slice %26 {offsets = [5, 0], sizes = [1, 128], strides = [1, 1]} : vector<8x128xf32> to vector<1x128xf32>
    %128 = vector.broadcast %126 : vector<64x1xf32> to vector<64x128xf32>
    %129 = vector.broadcast %127 : vector<1x128xf32> to vector<64x128xf32>
    %130 = arith.mulf %128, %129 : vector<64x128xf32>
    %131 = arith.addf %125, %130 : vector<64x128xf32>
    %132 = vector.extract_strided_slice %24 {offsets = [5, 0], sizes = [1, 64], strides = [1, 1]} : vector<8x64xf32> to vector<1x64xf32>
    %cst_41 = arith.constant dense<0.000000e+00> : vector<1x128xf32>
    %133 = tpu.matmul %132, %131, %cst_41 {dimension_numbers = #tpu.dot_dimension_numbers<[1], [0], [0], [1], [0, 0, 1, 1], [], []>} : vector<1x64xf32>, vector<64x128xf32>, vector<1x128xf32> -> vector<1x128xf32>
    %134 = vector.extract_strided_slice %29 {offsets = [5, 0], sizes = [1, 128], strides = [1, 1]} : vector<8x128xf32> to vector<1x128xf32>
    %135 = arith.addf %133, %134 : vector<1x128xf32>
    %c0_42 = arith.constant 0 : index
    %c5 = arith.constant 5 : index
    %c0_43 = arith.constant 0 : index
    %136 = vector.load %arg10[%c0_42, %c5, %c0_43] : memref<1x8x128xf32, #tpu.memory_space<vmem>>, vector<1x1x128xf32>
    %137 = vector.shape_cast %136 : vector<1x1x128xf32> to vector<1x128xf32>
    %138 = vector.shape_cast %135 : vector<1x128xf32> to vector<1x1x128xf32>
    tpu.vector_store %arg10[%c0_42, %c5, %c0_43], %138 {strides = array<i32>} : memref<1x8x128xf32, #tpu.memory_space<vmem>>, vector<1x1x128xf32>,
    %139 = vector.extract_strided_slice %20 {offsets = [6, 0], sizes = [1, 128], strides = [1, 1]} : vector<8x128xf32> to vector<1x128xf32>
    %140 = vector.broadcast %139 : vector<1x128xf32> to vector<64x128xf32>
    %141 = arith.mulf %25, %140 : vector<64x128xf32>
    %142 = math.exp %141 : vector<64x128xf32>
    %143 = arith.mulf %142, %131 : vector<64x128xf32>
    %144 = vector.extract_strided_slice %22 {offsets = [0, 6], sizes = [64, 1], strides = [1, 1]} : vector<64x8xf32> to vector<64x1xf32>
    %145 = vector.extract_strided_slice %26 {offsets = [6, 0], sizes = [1, 128], strides = [1, 1]} : vector<8x128xf32> to vector<1x128xf32>
    %146 = vector.broadcast %144 : vector<64x1xf32> to vector<64x128xf32>
    %147 = vector.broadcast %145 : vector<1x128xf32> to vector<64x128xf32>
    %148 = arith.mulf %146, %147 : vector<64x128xf32>
    %149 = arith.addf %143, %148 : vector<64x128xf32>
    %150 = vector.extract_strided_slice %24 {offsets = [6, 0], sizes = [1, 64], strides = [1, 1]} : vector<8x64xf32> to vector<1x64xf32>
    %cst_44 = arith.constant dense<0.000000e+00> : vector<1x128xf32>
    %151 = tpu.matmul %150, %149, %cst_44 {dimension_numbers = #tpu.dot_dimension_numbers<[1], [0], [0], [1], [0, 0, 1, 1], [], []>} : vector<1x64xf32>, vector<64x128xf32>, vector<1x128xf32> -> vector<1x128xf32>
    %152 = vector.extract_strided_slice %29 {offsets = [6, 0], sizes = [1, 128], strides = [1, 1]} : vector<8x128xf32> to vector<1x128xf32>
    %153 = arith.addf %151, %152 : vector<1x128xf32>
    %c0_45 = arith.constant 0 : index
    %c6 = arith.constant 6 : index
    %c0_46 = arith.constant 0 : index
    %154 = vector.load %arg10[%c0_45, %c6, %c0_46] : memref<1x8x128xf32, #tpu.memory_space<vmem>>, vector<1x1x128xf32>
    %155 = vector.shape_cast %154 : vector<1x1x128xf32> to vector<1x128xf32>
    %156 = vector.shape_cast %153 : vector<1x128xf32> to vector<1x1x128xf32>
    tpu.vector_store %arg10[%c0_45, %c6, %c0_46], %156 {strides = array<i32>} : memref<1x8x128xf32, #tpu.memory_space<vmem>>, vector<1x1x128xf32>,
    %157 = vector.extract_strided_slice %20 {offsets = [7, 0], sizes = [1, 128], strides = [1, 1]} : vector<8x128xf32> to vector<1x128xf32>
    %158 = vector.broadcast %157 : vector<1x128xf32> to vector<64x128xf32>
    %159 = arith.mulf %25, %158 : vector<64x128xf32>
    %160 = math.exp %159 : vector<64x128xf32>
    %161 = arith.mulf %160, %149 : vector<64x128xf32>
    %162 = vector.extract_strided_slice %22 {offsets = [0, 7], sizes = [64, 1], strides = [1, 1]} : vector<64x8xf32> to vector<64x1xf32>
    %163 = vector.extract_strided_slice %26 {offsets = [7, 0], sizes = [1, 128], strides = [1, 1]} : vector<8x128xf32> to vector<1x128xf32>
    %164 = vector.broadcast %162 : vector<64x1xf32> to vector<64x128xf32>
    %165 = vector.broadcast %163 : vector<1x128xf32> to vector<64x128xf32>
    %166 = arith.mulf %164, %165 : vector<64x128xf32>
    %167 = arith.addf %161, %166 : vector<64x128xf32>
    %168 = vector.extract_strided_slice %24 {offsets = [7, 0], sizes = [1, 64], strides = [1, 1]} : vector<8x64xf32> to vector<1x64xf32>
    %cst_47 = arith.constant dense<0.000000e+00> : vector<1x128xf32>
    %169 = tpu.matmul %168, %167, %cst_47 {dimension_numbers = #tpu.dot_dimension_numbers<[1], [0], [0], [1], [0, 0, 1, 1], [], []>} : vector<1x64xf32>, vector<64x128xf32>, vector<1x128xf32> -> vector<1x128xf32>
    %170 = vector.extract_strided_slice %29 {offsets = [7, 0], sizes = [1, 128], strides = [1, 1]} : vector<8x128xf32> to vector<1x128xf32>
    %171 = arith.addf %169, %170 : vector<1x128xf32>
    %c0_48 = arith.constant 0 : index
    %c7 = arith.constant 7 : index
    %c0_49 = arith.constant 0 : index
    %172 = vector.load %arg10[%c0_48, %c7, %c0_49] : memref<1x8x128xf32, #tpu.memory_space<vmem>>, vector<1x1x128xf32>
    %173 = vector.shape_cast %172 : vector<1x1x128xf32> to vector<1x128xf32>
    %174 = vector.shape_cast %171 : vector<1x128xf32> to vector<1x1x128xf32>
    tpu.vector_store %arg10[%c0_48, %c7, %c0_49], %174 {strides = array<i32>} : memref<1x8x128xf32, #tpu.memory_space<vmem>>, vector<1x1x128xf32>,
    %c0_50 = arith.constant 0 : index
    %c0_51 = arith.constant 0 : index
    %175 = vector.load %arg11[%c0_50, %c0_51] : memref<64x128xf32, #tpu.memory_space<vmem>>, vector<64x128xf32>
    tpu.vector_store %arg11[%c0_50, %c0_51], %167 {strides = array<i32>} : memref<64x128xf32, #tpu.memory_space<vmem>>, vector<64x128xf32>,
    return
  }
  func.func @transform_0(%arg0: i32, %arg1: i32) -> (i32, i32, i32) {
    %c0_i32 = arith.constant 0 : i32
    %c0_i32_0 = arith.constant 0 : i32
    return %arg0, %arg1, %c0_i32 : i32, i32, i32
  }
  func.func @transform_1(%arg0: i32, %arg1: i32) -> (i32, i32) {
    %c0_i32 = arith.constant 0 : i32
    %c0_i32_0 = arith.constant 0 : i32
    %c0_i32_1 = arith.constant 0 : i32
    return %c0_i32, %c0_i32_0 : i32, i32
  }
  func.func @transform_2(%arg0: i32, %arg1: i32) -> (i32, i32) {
    %c0_i32 = arith.constant 0 : i32
    %c0_i32_0 = arith.constant 0 : i32
    %c0_i32_1 = arith.constant 0 : i32
    return %c0_i32, %c0_i32_0 : i32, i32
  }
  func.func @transform_3(%arg0: i32, %arg1: i32) -> (i32, i32) {
    %c0_i32 = arith.constant 0 : i32
    %c0_i32_0 = arith.constant 0 : i32
    %c0_i32_1 = arith.constant 0 : i32
    return %c0_i32, %c0_i32_0 : i32, i32
  }
  func.func @transform_4(%arg0: i32, %arg1: i32) -> (i32, i32) {
    %c0_i32 = arith.constant 0 : i32
    %c0_i32_0 = arith.constant 0 : i32
    %c0_i32_1 = arith.constant 0 : i32
    return %c0_i32, %c0_i32_0 : i32, i32
  }
  func.func @transform_5(%arg0: i32, %arg1: i32) -> (i32, i32) {
    %c0_i32 = arith.constant 0 : i32
    %c0_i32_0 = arith.constant 0 : i32
    %c0_i32_1 = arith.constant 0 : i32
    return %c0_i32, %c0_i32_0 : i32, i32
  }
  func.func @transform_6(%arg0: i32, %arg1: i32) -> (i32, i32) {
    %c0_i32 = arith.constant 0 : i32
    %c0_i32_0 = arith.constant 0 : i32
    %c0_i32_1 = arith.constant 0 : i32
    return %c0_i32, %c0_i32_0 : i32, i32
  }
  func.func @transform_7(%arg0: i32, %arg1: i32) -> (i32, i32) {
    %c0_i32 = arith.constant 0 : i32
    %c0_i32_0 = arith.constant 0 : i32
    %c0_i32_1 = arith.constant 0 : i32
    return %c0_i32, %c0_i32_0 : i32, i32
  }
  func.func @transform_8(%arg0: i32, %arg1: i32) -> (i32, i32, i32) {
    %c0_i32 = arith.constant 0 : i32
    %c0_i32_0 = arith.constant 0 : i32
    return %arg0, %arg1, %c0_i32 : i32, i32, i32
  }
}

</mosaic_0001>

<llo_original>
// kernel: tpu_custom_call.1
$region0: #{tpu_custom_call.1}
  #allocation0 [shape = 'u32[]', space=smem, size = 0x4, offset = 0x4, fixed_abs, tag = 'smem constant byte address 0x4 - core index']
  #allocation1 [shape = 'u32[144,128]{1,0:T(1,128)}', space=vmem, size = 0x12000, scoped, tag = 'internal scratch']
  #allocation2 [shape = 'f32[64,128]{1,0:T(8,128)}', space=vmem, size = 0x8000, scoped, tag = 'scratch operand']
  %s0 = inlined_call_operand.vmem [shape: f32[2,8,128], index: 0, kind: input, shape index: {}]
  %s1 = inlined_call_operand.vmem [shape: f32[128,32], index: 1, kind: input, shape index: {}]
  %s2 = inlined_call_operand.vmem [shape: f32[32,128], index: 2, kind: input, shape index: {}]
  %s3 = inlined_call_operand.vmem [shape: f32[1,128], index: 3, kind: input, shape index: {}]
  %s4 = inlined_call_operand.vmem [shape: f32[64,128], index: 4, kind: input, shape index: {}]
  %s5 = inlined_call_operand.vmem [shape: f32[128,64], index: 5, kind: input, shape index: {}]
  %s6 = inlined_call_operand.vmem [shape: f32[64,128], index: 6, kind: input, shape index: {}]
  %s7 = inlined_call_operand.vmem [shape: f32[1,128], index: 7, kind: input, shape index: {}]
  %s8 = inlined_call_operand.hbm [shape: f32[2,8,128], index: 8, kind: output, shape index: {}]
  %s9 = sld [smem:[#allocation0]]
  $region69: #{tpu_custom_call.1} parent=0
    _
  %s11 = ssub.s32 1, %s9
  %s12 = scalar_select 0, %s11, %s9
  $region1: #{tpu_custom_call.1} parent=0
    #allocation3 [shape = 'u8[8192]{0}', space=vmem, size = 0x2000, scoped, tag = 'output window, operand 0']
    #allocation4 [shape = 's32[2]{0}', space=sflag, size = 0x8, scoped, tag = 'scoped memory for tpu_custom_call.1']
    %13 = vsyncpa [#allocation4], 0
    %s14 = scalar_lea.sflag [#allocation4], 1
    %15 = vsyncpa %s14, 0
    loop: start=0, step=1, limit=4
    $region2: #{tpu_custom_call.1} parent=1 // loop_pre_header
      _
    $region3: #{tpu_custom_call.1} parent=1 // loop_header
      %s17 = sphi 0, %s21
      %p18 = scmp.ge.s32.totalorder %s17, 4
      %s24 = sphi 0, %s36
      %s25 = sphi 0, %s32
      %s26 = sphi 0, %s24
      %s27 = sphi 0, %s25
      %s28 = sphi 0, %s26
      %s29 = sphi 0, %s27
      %s41 = sphi 0, %s43
      %s44 = sphi 0, %s41
      %s45 = sphi 0, %s44
      %s61 = sphi 0, %s45
      %s65 = sphi 0, %s65
      %s67 = sphi 0, %s65
      %s68 = sphi 0, %s67
      %s82 = sphi 0, %s68
      %s86 = sphi 0, %s86
      %s88 = sphi 0, %s86
      %s89 = sphi 0, %s88
      %s103 = sphi 0, %s89
      %s107 = sphi 0, %s107
      %s109 = sphi 0, %s107
      %s110 = sphi 0, %s109
      %s124 = sphi 0, %s110
      %s128 = sphi 0, %s128
      %s130 = sphi 0, %s128
      %s131 = sphi 0, %s130
      %s145 = sphi 0, %s131
      %s149 = sphi 0, %s149
      %s151 = sphi 0, %s149
      %s152 = sphi 0, %s151
      %s166 = sphi 0, %s152
      %s170 = sphi 0, %s170
      %s172 = sphi 0, %s170
      %s173 = sphi 0, %s172
      %s187 = sphi 0, %s173
      %s191 = sphi 0, %s191
      %s193 = sphi 0, %s191
      %s194 = sphi 0, %s193
      %s208 = sphi 0, %s194
      %s216 = sphi 0, %s218
      %s219 = sphi 0, %s216
      %s220 = sphi 0, %s219
      %s236 = sphi 0, %s220
    $region4: #{tpu_custom_call.1} parent=1 // loop_header_branch
      %20 = sbr.rel (%p18) target = $region8
    $region5: #{tpu_custom_call.1} parent=1 // loop_body
      %s22 = ssub.s32 %s17, 1
      %s23 = ssub.s32 %s17, 2
      %s30 = sadd.s32 1, %s25
      %p31 = scmp.ge.s32.totalorder %s30, 1
      %s32 = scalar_select %p31, 0, %s30
      %s33 = sadd.s32 1, %s24
      %s34 = scalar_select %p31, %s33, %s24
      %p35 = scmp.ge.s32.totalorder %s34, 2
      %s36 = scalar_select %p35, 0, %s34
      %s37 = ssub.s32 %s24, %s36
      %s38 = ssub.s32 %s25, %s32
      %s39 = sor.u32 %s37, %s38
      %p40 = scmp.eq.s32.totalorder %s39, 0
      %s42 = sadd.s32 %s41, 1
      %s43 = scalar_select %p40, %s41, %s42
      %p46 = pneg %p40
      %p47 = scmp.eq.s32.totalorder %s17, 1
      %p48 = por %p46, %p47
      %p49 = scmp.ne.s32.totalorder %s41, %s44
      %p50 = scmp.eq.s32.totalorder %s17, 0
      %p51 = por %p49, %p50
      %p52 = scmp.ne.s32.totalorder %s41, %s44
      %p53 = scmp.eq.s32.totalorder %s22, 1
      %p54 = por %p52, %p53
      %p55 = scmp.ne.s32.totalorder %s44, %s45
      %p56 = scmp.eq.s32.totalorder %s22, 0
      %p57 = por %p55, %p56
      %p58 = scmp.ne.s32.totalorder %s44, %s45
      %p59 = scmp.eq.s32.totalorder %s23, 1
      %p60 = por %p58, %p59
      %p62 = scmp.ne.s32.totalorder %s45, %s61
      %p63 = scmp.eq.s32.totalorder %s23, 0
      %p64 = por %p62, %p63
      %s66 = sadd.s32 %s65, 1
      %p69 = scmp.eq.s32.totalorder %s17, 1
      %p70 = scmp.ne.s32.totalorder %s65, %s67
      %p71 = scmp.eq.s32.totalorder %s17, 0
      %p72 = por %p70, %p71
      %p73 = scmp.ne.s32.totalorder %s65, %s67
      %p74 = scmp.eq.s32.totalorder %s22, 1
      %p75 = por %p73, %p74
      %p76 = scmp.ne.s32.totalorder %s67, %s68
      %p77 = scmp.eq.s32.totalorder %s22, 0
      %p78 = por %p76, %p77
      %p79 = scmp.ne.s32.totalorder %s67, %s68
      %p80 = scmp.eq.s32.totalorder %s23, 1
      %p81 = por %p79, %p80
      %p83 = scmp.ne.s32.totalorder %s68, %s82
      %p84 = scmp.eq.s32.totalorder %s23, 0
      %p85 = por %p83, %p84
      %s87 = sadd.s32 %s86, 1
      %p90 = scmp.eq.s32.totalorder %s17, 1
      %p91 = scmp.ne.s32.totalorder %s86, %s88
      %p92 = scmp.eq.s32.totalorder %s17, 0
      %p93 = por %p91, %p92
      %p94 = scmp.ne.s32.totalorder %s86, %s88
      %p95 = scmp.eq.s32.totalorder %s22, 1
      %p96 = por %p94, %p95
      %p97 = scmp.ne.s32.totalorder %s88, %s89
      %p98 = scmp.eq.s32.totalorder %s22, 0
      %p99 = por %p97, %p98
      %p100 = scmp.ne.s32.totalorder %s88, %s89
      %p101 = scmp.eq.s32.totalorder %s23, 1
      %p102 = por %p100, %p101
      %p104 = scmp.ne.s32.totalorder %s89, %s103
      %p105 = scmp.eq.s32.totalorder %s23, 0
      %p106 = por %p104, %p105
      %s108 = sadd.s32 %s107, 1
      %p111 = scmp.eq.s32.totalorder %s17, 1
      %p112 = scmp.ne.s32.totalorder %s107, %s109
      %p113 = scmp.eq.s32.totalorder %s17, 0
      %p114 = por %p112, %p113
      %p115 = scmp.ne.s32.totalorder %s107, %s109
      %p116 = scmp.eq.s32.totalorder %s22, 1
      %p117 = por %p115, %p116
      %p118 = scmp.ne.s32.totalorder %s109, %s110
      %p119 = scmp.eq.s32.totalorder %s22, 0
      %p120 = por %p118, %p119
      %p121 = scmp.ne.s32.totalorder %s109, %s110
      %p122 = scmp.eq.s32.totalorder %s23, 1
      %p123 = por %p121, %p122
      %p125 = scmp.ne.s32.totalorder %s110, %s124
      %p126 = scmp.eq.s32.totalorder %s23, 0
      %p127 = por %p125, %p126
      %s129 = sadd.s32 %s128, 1
      %p132 = scmp.eq.s32.totalorder %s17, 1
      %p133 = scmp.ne.s32.totalorder %s128, %s130
      %p134 = scmp.eq.s32.totalorder %s17, 0
      %p135 = por %p133, %p134
      %p136 = scmp.ne.s32.totalorder %s128, %s130
      %p137 = scmp.eq.s32.totalorder %s22, 1
      %p138 = por %p136, %p137
      %p139 = scmp.ne.s32.totalorder %s130, %s131
      %p140 = scmp.eq.s32.totalorder %s22, 0
      %p141 = por %p139, %p140
      %p142 = scmp.ne.s32.totalorder %s130, %s131
      %p143 = scmp.eq.s32.totalorder %s23, 1
      %p144 = por %p142, %p143
      %p146 = scmp.ne.s32.totalorder %s131, %s145
      %p147 = scmp.eq.s32.totalorder %s23, 0
      %p148 = por %p146, %p147
      %s150 = sadd.s32 %s149, 1
      %p153 = scmp.eq.s32.totalorder %s17, 1
      %p154 = scmp.ne.s32.totalorder %s149, %s151
      %p155 = scmp.eq.s32.totalorder %s17, 0
      %p156 = por %p154, %p155
      %p157 = scmp.ne.s32.totalorder %s149, %s151
      %p158 = scmp.eq.s32.totalorder %s22, 1
      %p159 = por %p157, %p158
      %p160 = scmp.ne.s32.totalorder %s151, %s152
      %p161 = scmp.eq.s32.totalorder %s22, 0
      %p162 = por %p160, %p161
      %p163 = scmp.ne.s32.totalorder %s151, %s152
      %p164 = scmp.eq.s32.totalorder %s23, 1
      %p165 = por %p163, %p164
      %p167 = scmp.ne.s32.totalorder %s152, %s166
      %p168 = scmp.eq.s32.totalorder %s23, 0
      %p169 = por %p167, %p168
      %s171 = sadd.s32 %s170, 1
      %p174 = scmp.eq.s32.totalorder %s17, 1
      %p175 = scmp.ne.s32.totalorder %s170, %s172
      %p176 = scmp.eq.s32.totalorder %s17, 0
      %p177 = por %p175, %p176
      %p178 = scmp.ne.s32.totalorder %s170, %s172
      %p179 = scmp.eq.s32.totalorder %s22, 1
      %p180 = por %p178, %p179
      %p181 = scmp.ne.s32.totalorder %s172, %s173
      %p182 = scmp.eq.s32.totalorder %s22, 0
      %p183 = por %p181, %p182
      %p184 = scmp.ne.s32.totalorder %s172, %s173
      %p185 = scmp.eq.s32.totalorder %s23, 1
      %p186 = por %p184, %p185
      %p188 = scmp.ne.s32.totalorder %s173, %s187
      %p189 = scmp.eq.s32.totalorder %s23, 0
      %p190 = por %p188, %p189
      %s192 = sadd.s32 %s191, 1
      %p195 = scmp.eq.s32.totalorder %s17, 1
      %p196 = scmp.ne.s32.totalorder %s191, %s193
      %p197 = scmp.eq.s32.totalorder %s17, 0
      %p198 = por %p196, %p197
      %p199 = scmp.ne.s32.totalorder %s191, %s193
      %p200 = scmp.eq.s32.totalorder %s22, 1
      %p201 = por %p199, %p200
      %p202 = scmp.ne.s32.totalorder %s193, %s194
      %p203 = scmp.eq.s32.totalorder %s22, 0
      %p204 = por %p202, %p203
      %p205 = scmp.ne.s32.totalorder %s193, %s194
      %p206 = scmp.eq.s32.totalorder %s23, 1
      %p207 = por %p205, %p206
      %p209 = scmp.ne.s32.totalorder %s194, %s208
      %p210 = scmp.eq.s32.totalorder %s23, 0
      %p211 = por %p209, %p210
      %s212 = ssub.s32 %s24, %s36
      %s213 = ssub.s32 %s25, %s32
      %s214 = sor.u32 %s212, %s213
      %p215 = scmp.eq.s32.totalorder %s214, 0
      %s217 = sadd.s32 %s216, 1
      %s218 = scalar_select %p215, %s216, %s217
      %p221 = pneg %p215
      %p222 = scmp.eq.s32.totalorder %s17, 1
      %p223 = por %p221, %p222
      %p224 = scmp.ne.s32.totalorder %s216, %s219
      %p225 = scmp.eq.s32.totalorder %s17, 0
      %p226 = por %p224, %p225
      %p227 = scmp.ne.s32.totalorder %s216, %s219
      %p228 = scmp.eq.s32.totalorder %s22, 1
      %p229 = por %p227, %p228
      %p230 = scmp.ne.s32.totalorder %s219, %s220
      %p231 = scmp.eq.s32.totalorder %s22, 0
      %p232 = por %p230, %p231
      %p233 = scmp.ne.s32.totalorder %s219, %s220
      %p234 = scmp.eq.s32.totalorder %s23, 1
      %p235 = por %p233, %p234
      %p237 = scmp.ne.s32.totalorder %s220, %s236
      %p238 = scmp.eq.s32.totalorder %s23, 0
      %p239 = por %p237, %p238
      %p240 = scmp.le.s32.totalorder 1, %s17
      %p241 = scmp.lt.s32.totalorder %s17, 3
      %p242 = pnand %p240, %p241
      %p243 = pneg %p242
      // Predicated region
      $region9: #{tpu_custom_call.1} parent=5 // pred_check
        _
      $region10: #{tpu_custom_call.1} parent=5 // pred_check_branch
        %245 = sbr.rel (%p242) target = $region12
      $region11: #{tpu_custom_call.1} parent=5 // pred_region
        %s246 = ssub.s32 %s17, 1
        // Predicated region
        $region13: #{tpu_custom_call.1} parent=11 // pred_check
          %p247 = pneg %p78
        $region14: #{tpu_custom_call.1} parent=11 // pred_check_branch
          %249 = sbr.rel (%p247) target = $region16
        $region15: #{tpu_custom_call.1} parent=11 // pred_region
          _
        $region16: #{tpu_custom_call.1} parent=11 // pred_fallthru
          _
        // Predicated region
        $region17: #{tpu_custom_call.1} parent=11 // pred_check
          %p250 = pneg %p99
        $region18: #{tpu_custom_call.1} parent=11 // pred_check_branch
          %252 = sbr.rel (%p250) target = $region20
        $region19: #{tpu_custom_call.1} parent=11 // pred_region
          _
        $region20: #{tpu_custom_call.1} parent=11 // pred_fallthru
          _
        // Predicated region
        $region21: #{tpu_custom_call.1} parent=11 // pred_check
          %p253 = pneg %p120
        $region22: #{tpu_custom_call.1} parent=11 // pred_check_branch
          %255 = sbr.rel (%p253) target = $region24
        $region23: #{tpu_custom_call.1} parent=11 // pred_region
          _
        $region24: #{tpu_custom_call.1} parent=11 // pred_fallthru
          _
        // Predicated region
        $region25: #{tpu_custom_call.1} parent=11 // pred_check
          %p256 = pneg %p141
        $region26: #{tpu_custom_call.1} parent=11 // pred_check_branch
          %258 = sbr.rel (%p256) target = $region28
        $region27: #{tpu_custom_call.1} parent=11 // pred_region
          _
        $region28: #{tpu_custom_call.1} parent=11 // pred_fallthru
          _
        // Predicated region
        $region29: #{tpu_custom_call.1} parent=11 // pred_check
          %p259 = pneg %p162
        $region30: #{tpu_custom_call.1} parent=11 // pred_check_branch
          %261 = sbr.rel (%p259) target = $region32
        $region31: #{tpu_custom_call.1} parent=11 // pred_region
          _
        $region32: #{tpu_custom_call.1} parent=11 // pred_fallthru
          _
        // Predicated region
        $region33: #{tpu_custom_call.1} parent=11 // pred_check
          %p262 = pneg %p183
        $region34: #{tpu_custom_call.1} parent=11 // pred_check_branch
          %264 = sbr.rel (%p262) target = $region36
        $region35: #{tpu_custom_call.1} parent=11 // pred_region
          _
        $region36: #{tpu_custom_call.1} parent=11 // pred_fallthru
          _
        // Predicated region
        $region37: #{tpu_custom_call.1} parent=11 // pred_check
          %p265 = pneg %p204
        $region38: #{tpu_custom_call.1} parent=11 // pred_check_branch
          %267 = sbr.rel (%p265) target = $region40
        $region39: #{tpu_custom_call.1} parent=11 // pred_region
          _
        $region40: #{tpu_custom_call.1} parent=11 // pred_fallthru
          _
      $region12: #{tpu_custom_call.1} parent=5 // pred_fallthru
        _
      %p268 = scmp.lt.s32.totalorder %s17, 2
      // Predicated region
      $region41: #{tpu_custom_call.1} parent=5 // pred_check
        %p269 = pneg %p268
      $region42: #{tpu_custom_call.1} parent=5 // pred_check_branch
        %271 = sbr.rel (%p269) target = $region44
      $region43: #{tpu_custom_call.1} parent=5 // pred_region
        // Predicated region
        $region45: #{tpu_custom_call.1} parent=43 // pred_check
          %p272 = pneg %p51
        $region46: #{tpu_custom_call.1} parent=43 // pred_check_branch
          %274 = sbr.rel (%p272) target = $region48
        $region47: #{tpu_custom_call.1} parent=43 // pred_region
          %p275 = scmp.lt.s32.totalorder %s24, 1
          %s276 = scalar_select %p275, %s24, 1
          %p277 = scmp.lt.s32.totalorder %s25, 0
          %s278 = scalar_select %p277, %s25, 0
          %s279 = sadd.s32 %s278, %s276
          %s280 = smul.addr %s279, 8
          %s281 = scalar_lea.vmem %s0, %s280
        $region48: #{tpu_custom_call.1} parent=43 // pred_fallthru
          _
      $region44: #{tpu_custom_call.1} parent=5 // pred_fallthru
        _
      %p282 = scmp.le.s32.totalorder 1, %s17
      %p283 = scmp.lt.s32.totalorder %s17, 3
      %p284 = pnand %p282, %p283
      %p285 = pneg %p284
      // Predicated region
      $region49: #{tpu_custom_call.1} parent=5 // pred_check
        _
      $region50: #{tpu_custom_call.1} parent=5 // pred_check_branch
        %287 = sbr.rel (%p284) target = $region52
      $region51: #{tpu_custom_call.1} parent=5 // pred_region
        %s288 = ssub.s32 %s17, 1
        %p289 = scmp.lt.s32.totalorder %s26, 1
        %s290 = scalar_select %p289, %s26, 1
        %p291 = scmp.lt.s32.totalorder %s27, 0
        %s292 = scalar_select %p291, %s27, 0
        %s293 = sadd.s32 %s292, %s290
        %s294 = smul.addr %s293, 8
        %s295 = scalar_lea.vmem %s0, %s294
        %p296 = pneg %p57
        %p297 = pneg %p54
        %p298 = pneg %p78
        %p299 = pneg %p75
        %p300 = pneg %p99
        %p301 = pneg %p96
        %p302 = pneg %p120
        %p303 = pneg %p117
        %p304 = pneg %p141
        %p305 = pneg %p138
        %p306 = pneg %p162
        %p307 = pneg %p159
        %p308 = pneg %p183
        %p309 = pneg %p180
        %p310 = pneg %p204
        %p311 = pneg %p201
        %p312 = pneg %p232
        %p313 = pneg %p229
        %s314 = sand.u32 %s219, 1
        %s315 = scalar_lea.sflag [#allocation4], %s314
        %s316 = sand.u32 %s219, 1
        %s317 = smul.addr %s316, 8
        %s318 = scalar_lea.vmem [#allocation3], %s317
        %p319 = scmp.lt.s32.totalorder %s26, 1
        %s320 = scalar_select %p319, %s26, 1
        %p321 = scmp.lt.s32.totalorder %s27, 0
        %s322 = scalar_select %p321, %s27, 0
        %s323 = sadd.s32 %s322, %s320
        %s324 = smul.addr %s323, 8
        %s325 = scalar_lea.vmem %s0, %s324
        %p326 = scmp.eq.s32.totalorder %s27, 0
        // Predicated region
        $region53: #{tpu_custom_call.1} parent=51 // pred_check
          %p327 = pneg %p326
        $region54: #{tpu_custom_call.1} parent=51 // pred_check_branch
          %329 = sbr.rel (%p327) target = $region56
        $region55: #{tpu_custom_call.1} parent=51 // pred_region
          %330 = vst [vmem:[#allocation2] sm:$0xff] 0.0
          %331 = vst [vmem:[#allocation2 + $0x8] sm:$0xff] 0.0
          %332 = vst [vmem:[#allocation2 + $0x10] sm:$0xff] 0.0
          %333 = vst [vmem:[#allocation2 + $0x18] sm:$0xff] 0.0
          %334 = vst [vmem:[#allocation2 + $0x20] sm:$0xff] 0.0
          %335 = vst [vmem:[#allocation2 + $0x28] sm:$0xff] 0.0
          %336 = vst [vmem:[#allocation2 + $0x30] sm:$0xff] 0.0
          %337 = vst [vmem:[#allocation2 + $0x38] sm:$0xff] 0.0
        $region56: #{tpu_custom_call.1} parent=51 // pred_fallthru
          _
        %v338 = vld [vmem:[%s325] sm:$0xff]
        %v339 = vld [vmem:[%s1] sm:$0xff]
        %v340 = vld [vmem:[%s1 + $0x8] sm:$0xff]
        %v341 = vld [vmem:[%s1 + $0x10] sm:$0xff]
        %v342 = vld [vmem:[%s1 + $0x18] sm:$0xff]
        %v343 = vld [vmem:[%s1 + $0x20] sm:$0xff]
        %v344 = vld [vmem:[%s1 + $0x28] sm:$0xff]
        %v345 = vld [vmem:[%s1 + $0x30] sm:$0xff]
        %v346 = vld [vmem:[%s1 + $0x38] sm:$0xff]
        %v347 = vld [vmem:[%s1 + $0x40] sm:$0xff]
        %v348 = vld [vmem:[%s1 + $0x48] sm:$0xff]
        %v349 = vld [vmem:[%s1 + $0x50] sm:$0xff]
        %v350 = vld [vmem:[%s1 + $0x58] sm:$0xff]
        %v351 = vld [vmem:[%s1 + $0x60] sm:$0xff]
        %v352 = vld [vmem:[%s1 + $0x68] sm:$0xff]
        %v353 = vld [vmem:[%s1 + $0x70] sm:$0xff]
        %v354 = vld [vmem:[%s1 + $0x78] sm:$0xff]
        %355 = vmatprep.subr.mxu0 0.0
        %356 = vmatpush1.msra.mxu0 %v354
        %357 = vmatprep.subr.mxu0 0.0
        %358 = vmatpush1.msra.mxu0 %v353
        %359 = vmatprep.subr.mxu0 0.0
        %360 = vmatpush1.msra.mxu0 %v352
        %361 = vmatprep.subr.mxu0 0.0
        %362 = vmatpush1.msra.mxu0 %v351
        %363 = vmatprep.subr.mxu0 0.0
        %364 = vmatpush1.msra.mxu0 %v350
        %365 = vmatprep.subr.mxu0 0.0
        %366 = vmatpush1.msra.mxu0 %v349
        %367 = vmatprep.subr.mxu0 0.0
        %368 = vmatpush1.msra.mxu0 %v348
        %369 = vmatprep.subr.mxu0 0.0
        %370 = vmatpush1.msra.mxu0 %v347
        %371 = vmatprep.subr.mxu0 0.0
        %372 = vmatpush1.msra.mxu0 %v346
        %373 = vmatprep.subr.mxu0 0.0
        %374 = vmatpush1.msra.mxu0 %v345
        %375 = vmatprep.subr.mxu0 0.0
        %376 = vmatpush1.msra.mxu0 %v344
        %377 = vmatprep.subr.mxu0 0.0
        %378 = vmatpush1.msra.mxu0 %v343
        %379 = vmatprep.subr.mxu0 0.0
        %380 = vmatpush1.msra.mxu0 %v342
        %381 = vmatprep.subr.mxu0 0.0
        %382 = vmatpush1.msra.mxu0 %v341
        %383 = vmatprep.subr.mxu0 0.0
        %384 = vmatpush1.msra.mxu0 %v340
        %385 = vmatprep.subr.mxu0 0.0
        %386 = vmatpush1.msra.mxu0 %v339
        %387 = vmatprep.subr.mxu0 0.0
        %388 = vmatpush2.msra.mxu0 0.0
        %389 = vmatprep.subr.mxu0 0.0
        %390 = vmatpush2.msra.mxu0 0.0
        %391 = vmatprep.subr.mxu0 0.0
        %392 = vmatpush2.msra.mxu0 0.0
        %393 = vmatprep.subr.mxu0 0.0
        %394 = vmatpush2.msra.mxu0 0.0
        %395 = vmatprep.subr.mxu0 0.0
        %396 = vmatpush2.msra.mxu0 0.0
        %397 = vmatprep.subr.mxu0 0.0
        %398 = vmatpush2.msra.mxu0 0.0
        %399 = vmatprep.subr.mxu0 0.0
        %400 = vmatpush2.msra.mxu0 0.0
        %401 = vmatprep.subr.mxu0 0.0
        %402 = vmatpush2.msra.mxu0 0.0
        %403 = vmatprep.subr.mxu0 0.0
        %404 = vmatpush2.msra.mxu0 0.0
        %405 = vmatprep.subr.mxu0 0.0
        %406 = vmatpush2.msra.mxu0 0.0
        %407 = vmatprep.subr.mxu0 0.0
        %408 = vmatpush2.msra.mxu0 0.0
        %409 = vmatprep.subr.mxu0 0.0
        %410 = vmatpush2.msra.mxu0 0.0
        %411 = vmatprep.subr.mxu0 0.0
        %412 = vmatpush2.msra.mxu0 0.0
        %413 = vmatprep.subr.mxu0 0.0
        %414 = vmatpush2.msra.mxu0 0.0
        %415 = vmatprep.subr.mxu0 0.0
        %416 = vmatpush2.msra.mxu0 0.0
        %417 = vmatprep.subr.mxu0 0.0
        %418 = vmatpush2.msra.mxu0 0.0
        %419 = vmatprep.mubr.f32.mxu0 0.0
        %420 = vmatmul.mubr.f32.gmra.mxu0 %v338
        %v421 = vpop.f32.mrf.mxu0
        %v422 = vadd.f32 0.0, %v421
        %v423 = vpop.f32.mrf.mxu0
        %424 = vdwg.mxu0
        %v425 = vld [vmem:[%s2] sm:$0xff]
        %v426 = vld [vmem:[%s2 + $0x8] sm:$0xff]
        %v427 = vld [vmem:[%s2 + $0x10] sm:$0xff]
        %v428 = vld [vmem:[%s2 + $0x18] sm:$0xff]
        %v429 = vld [vmem:[%s3] sm:$0x1]
        %v431 = vlaneseq
        %v432 = vshrl.u32 %v431, 7
        %v433 = vsub.s32 0, %v432
        %v434 = vrot.slane %v429, %v433
        %vm436 = vcmask 261120
        %v438 = vsel %vm436, %v422, 0
        %440 = vmatprep.subr.mxu0 0.0
        %441 = vmatpush1.msra.mxu0 0.0
        %442 = vmatprep.subr.mxu0 0.0
        %443 = vmatpush1.msra.mxu0 0.0
        %444 = vmatprep.subr.mxu0 0.0
        %445 = vmatpush1.msra.mxu0 0.0
        %446 = vmatprep.subr.mxu0 0.0
        %447 = vmatpush1.msra.mxu0 0.0
        %448 = vmatprep.subr.mxu0 0.0
        %449 = vmatpush1.msra.mxu0 0.0
        %450 = vmatprep.subr.mxu0 0.0
        %451 = vmatpush1.msra.mxu0 0.0
        %452 = vmatprep.subr.mxu0 0.0
        %453 = vmatpush1.msra.mxu0 0.0
        %454 = vmatprep.subr.mxu0 0.0
        %455 = vmatpush1.msra.mxu0 0.0
        %456 = vmatprep.subr.mxu0 0.0
        %457 = vmatpush1.msra.mxu0 0.0
        %458 = vmatprep.subr.mxu0 0.0
        %459 = vmatpush1.msra.mxu0 0.0
        %460 = vmatprep.subr.mxu0 0.0
        %461 = vmatpush1.msra.mxu0 0.0
        %462 = vmatprep.subr.mxu0 0.0
        %463 = vmatpush1.msra.mxu0 0.0
        %464 = vmatprep.subr.mxu0 0.0
        %465 = vmatpush1.msra.mxu0 %v428
        %466 = vmatprep.subr.mxu0 0.0
        %467 = vmatpush1.msra.mxu0 %v427
        %468 = vmatprep.subr.mxu0 0.0
        %469 = vmatpush1.msra.mxu0 %v426
        %470 = vmatprep.subr.mxu0 0.0
        %471 = vmatpush1.msra.mxu0 %v425
        %472 = vmatprep.subr.mxu0 0.0
        %473 = vmatpush2.msra.mxu0 0.0
        %474 = vmatprep.subr.mxu0 0.0
        %475 = vmatpush2.msra.mxu0 0.0
        %476 = vmatprep.subr.mxu0 0.0
        %477 = vmatpush2.msra.mxu0 0.0
        %478 = vmatprep.subr.mxu0 0.0
        %479 = vmatpush2.msra.mxu0 0.0
        %480 = vmatprep.subr.mxu0 0.0
        %481 = vmatpush2.msra.mxu0 0.0
        %482 = vmatprep.subr.mxu0 0.0
        %483 = vmatpush2.msra.mxu0 0.0
        %484 = vmatprep.subr.mxu0 0.0
        %485 = vmatpush2.msra.mxu0 0.0
        %486 = vmatprep.subr.mxu0 0.0
        %487 = vmatpush2.msra.mxu0 0.0
        %488 = vmatprep.subr.mxu0 0.0
        %489 = vmatpush2.msra.mxu0 0.0
        %490 = vmatprep.subr.mxu0 0.0
        %491 = vmatpush2.msra.mxu0 0.0
        %492 = vmatprep.subr.mxu0 0.0
        %493 = vmatpush2.msra.mxu0 0.0
        %494 = vmatprep.subr.mxu0 0.0
        %495 = vmatpush2.msra.mxu0 0.0
        %496 = vmatprep.subr.mxu0 0.0
        %497 = vmatpush2.msra.mxu0 0.0
        %498 = vmatprep.subr.mxu0 0.0
        %499 = vmatpush2.msra.mxu0 0.0
        %500 = vmatprep.subr.mxu0 0.0
        %501 = vmatpush2.msra.mxu0 0.0
        %502 = vmatprep.subr.mxu0 0.0
        %503 = vmatpush2.msra.mxu0 0.0
        %504 = vmatprep.mubr.f32.mxu0 0.0
        %505 = vmatmul.mubr.f32.gmra.mxu0 %v438
        %v506 = vpop.f32.mrf.mxu0
        %v507 = vadd.f32 %v434, %v506
        %v508 = vpop.f32.mrf.mxu0
        %509 = vdwg.mxu0
        %vm510 = vcmp.gt.f32.partialorder %v507, 20.0
        %v511 = vmin.f32 %v507, 20.0
        %v512 = vmul.f32 %v511, 1.442695
        %v513 = vpow.pop %v512
        %v514 = vadd.f32 %v513, 1.0
        %v515 = vlog2.pop %v514
        %v516 = vmul.f32 %v515, 0.6931472
        %v517 = vsel %vm510, %v507, %v516
        %v518 = vld [vmem:[%s4] sm:$0xff]
        %v519 = vld [vmem:[%s4 + $0x8] sm:$0xff]
        %v520 = vld [vmem:[%s4 + $0x10] sm:$0xff]
        %v521 = vld [vmem:[%s4 + $0x18] sm:$0xff]
        %v522 = vld [vmem:[%s4 + $0x20] sm:$0xff]
        %v523 = vld [vmem:[%s4 + $0x28] sm:$0xff]
        %v524 = vld [vmem:[%s4 + $0x30] sm:$0xff]
        %v525 = vld [vmem:[%s4 + $0x38] sm:$0xff]
        %526 = vmatprep.subr.mxu0 0.0
        %527 = vmatpush1.xpose.msra.mxu0 0.0
        %528 = vmatprep.subr.mxu0 0.0
        %529 = vmatpush1.xpose.msra.mxu0 0.0
        %530 = vmatprep.subr.mxu0 0.0
        %531 = vmatpush1.xpose.msra.mxu0 0.0
        %532 = vmatprep.subr.mxu0 0.0
        %533 = vmatpush1.xpose.msra.mxu0 0.0
        %534 = vmatprep.subr.mxu0 0.0
        %535 = vmatpush1.xpose.msra.mxu0 0.0
        %536 = vmatprep.subr.mxu0 0.0
        %537 = vmatpush1.xpose.msra.mxu0 0.0
        %538 = vmatprep.subr.mxu0 0.0
        %539 = vmatpush1.xpose.msra.mxu0 0.0
        %540 = vmatprep.subr.mxu0 0.0
        %541 = vmatpush1.xpose.msra.mxu0 0.0
        %542 = vmatprep.subr.mxu0 0.0
        %543 = vmatpush1.xpose.msra.mxu0 0.0
        %544 = vmatprep.subr.mxu0 0.0
        %545 = vmatpush1.xpose.msra.mxu0 0.0
        %546 = vmatprep.subr.mxu0 0.0
        %547 = vmatpush1.xpose.msra.mxu0 0.0
        %548 = vmatprep.subr.mxu0 0.0
        %549 = vmatpush1.xpose.msra.mxu0 0.0
        %550 = vmatprep.subr.mxu0 0.0
        %551 = vmatpush1.xpose.msra.mxu0 0.0
        %552 = vmatprep.subr.mxu0 0.0
        %553 = vmatpush1.xpose.msra.mxu0 0.0
        %554 = vmatprep.subr.mxu0 0.0
        %555 = vmatpush1.xpose.msra.mxu0 0.0
        %556 = vmatprep.subr.mxu0 0.0
        %557 = vmatpush1.xpose.msra.mxu0 %v338
        %558 = vmatprep.subr.mxu0 0.0
        %559 = vmatpush2.xpose.msra.mxu0 0.0
        %560 = vmatprep.subr.mxu0 0.0
        %561 = vmatpush2.xpose.msra.mxu0 0.0
        %562 = vmatprep.subr.mxu0 0.0
        %563 = vmatpush2.xpose.msra.mxu0 0.0
        %564 = vmatprep.subr.mxu0 0.0
        %565 = vmatpush2.xpose.msra.mxu0 0.0
        %566 = vmatprep.subr.mxu0 0.0
        %567 = vmatpush2.xpose.msra.mxu0 0.0
        %568 = vmatprep.subr.mxu0 0.0
        %569 = vmatpush2.xpose.msra.mxu0 0.0
        %570 = vmatprep.subr.mxu0 0.0
        %571 = vmatpush2.xpose.msra.mxu0 0.0
        %572 = vmatprep.subr.mxu0 0.0
        %573 = vmatpush2.xpose.msra.mxu0 0.0
        %574 = vmatprep.subr.mxu0 0.0
        %575 = vmatpush2.xpose.msra.mxu0 0.0
        %576 = vmatprep.subr.mxu0 0.0
        %577 = vmatpush2.xpose.msra.mxu0 0.0
        %578 = vmatprep.subr.mxu0 0.0
        %579 = vmatpush2.xpose.msra.mxu0 0.0
        %580 = vmatprep.subr.mxu0 0.0
        %581 = vmatpush2.xpose.msra.mxu0 0.0
        %582 = vmatprep.subr.mxu0 0.0
        %583 = vmatpush2.xpose.msra.mxu0 0.0
        %584 = vmatprep.subr.mxu0 0.0
        %585 = vmatpush2.xpose.msra.mxu0 0.0
        %586 = vmatprep.subr.mxu0 0.0
        %587 = vmatpush2.xpose.msra.mxu0 0.0
        %588 = vmatprep.subr.mxu0 0.0
        %589 = vmatpush2.xpose.msra.mxu0 0.0
        %590 = vmatprep.mubr.f32.mxu0 0.0
        %591 = vmatmul.mubr.f32.gmra.mxu0 %v518
        %v592 = vpop.f32.mrf.mxu0
        %v593 = vadd.f32 0.0, %v592
        %v594 = vpop.f32.mrf.mxu0
        %595 = vmatprep.mubr.f32.mxu0 0.0
        %596 = vmatmul.mubr.f32.gmra.mxu0 %v519
        %v597 = vpop.f32.mrf.mxu0
        %v598 = vadd.f32 0.0, %v597
        %v599 = vpop.f32.mrf.mxu0
        %600 = vmatprep.mubr.f32.mxu0 0.0
        %601 = vmatmul.mubr.f32.gmra.mxu0 %v520
        %v602 = vpop.f32.mrf.mxu0
        %v603 = vadd.f32 0.0, %v602
        %v604 = vpop.f32.mrf.mxu0
        %605 = vmatprep.mubr.f32.mxu0 0.0
        %606 = vmatmul.mubr.f32.gmra.mxu0 %v521
        %v607 = vpop.f32.mrf.mxu0
        %v608 = vadd.f32 0.0, %v607
        %v609 = vpop.f32.mrf.mxu0
        %610 = vmatprep.mubr.f32.mxu0 0.0
        %611 = vmatmul.mubr.f32.gmra.mxu0 %v522
        %v612 = vpop.f32.mrf.mxu0
        %v613 = vadd.f32 0.0, %v612
        %v614 = vpop.f32.mrf.mxu0
        %615 = vmatprep.mubr.f32.mxu0 0.0
        %616 = vmatmul.mubr.f32.gmra.mxu0 %v523
        %v617 = vpop.f32.mrf.mxu0
        %v618 = vadd.f32 0.0, %v617
        %v619 = vpop.f32.mrf.mxu0
        %620 = vmatprep.mubr.f32.mxu0 0.0
        %621 = vmatmul.mubr.f32.gmra.mxu0 %v524
        %v622 = vpop.f32.mrf.mxu0
        %v623 = vadd.f32 0.0, %v622
        %v624 = vpop.f32.mrf.mxu0
        %625 = vmatprep.mubr.f32.mxu0 0.0
        %626 = vmatmul.mubr.f32.gmra.mxu0 %v525
        %v627 = vpop.f32.mrf.mxu0
        %v628 = vadd.f32 0.0, %v627
        %v629 = vpop.f32.mrf.mxu0
        %630 = vdwg.mxu0
        %v631 = vld [vmem:[%s5] sm:$0xff]
        %v632 = vld [vmem:[%s5 + $0x8] sm:$0xff]
        %v633 = vld [vmem:[%s5 + $0x10] sm:$0xff]
        %v634 = vld [vmem:[%s5 + $0x18] sm:$0xff]
        %v635 = vld [vmem:[%s5 + $0x20] sm:$0xff]
        %v636 = vld [vmem:[%s5 + $0x28] sm:$0xff]
        %v637 = vld [vmem:[%s5 + $0x30] sm:$0xff]
        %v638 = vld [vmem:[%s5 + $0x38] sm:$0xff]
        %v639 = vld [vmem:[%s5 + $0x40] sm:$0xff]
        %v640 = vld [vmem:[%s5 + $0x48] sm:$0xff]
        %v641 = vld [vmem:[%s5 + $0x50] sm:$0xff]
        %v642 = vld [vmem:[%s5 + $0x58] sm:$0xff]
        %v643 = vld [vmem:[%s5 + $0x60] sm:$0xff]
        %v644 = vld [vmem:[%s5 + $0x68] sm:$0xff]
        %v645 = vld [vmem:[%s5 + $0x70] sm:$0xff]
        %v646 = vld [vmem:[%s5 + $0x78] sm:$0xff]
        %647 = vmatprep.subr.mxu0 0.0
        %648 = vmatpush1.msra.mxu0 %v646
        %649 = vmatprep.subr.mxu0 0.0
        %650 = vmatpush1.msra.mxu0 %v645
        %651 = vmatprep.subr.mxu0 0.0
        %652 = vmatpush1.msra.mxu0 %v644
        %653 = vmatprep.subr.mxu0 0.0
        %654 = vmatpush1.msra.mxu0 %v643
        %655 = vmatprep.subr.mxu0 0.0
        %656 = vmatpush1.msra.mxu0 %v642
        %657 = vmatprep.subr.mxu0 0.0
        %658 = vmatpush1.msra.mxu0 %v641
        %659 = vmatprep.subr.mxu0 0.0
        %660 = vmatpush1.msra.mxu0 %v640
        %661 = vmatprep.subr.mxu0 0.0
        %662 = vmatpush1.msra.mxu0 %v639
        %663 = vmatprep.subr.mxu0 0.0
        %664 = vmatpush1.msra.mxu0 %v638
        %665 = vmatprep.subr.mxu0 0.0
        %666 = vmatpush1.msra.mxu0 %v637
        %667 = vmatprep.subr.mxu0 0.0
        %668 = vmatpush1.msra.mxu0 %v636
        %669 = vmatprep.subr.mxu0 0.0
        %670 = vmatpush1.msra.mxu0 %v635
        %671 = vmatprep.subr.mxu0 0.0
        %672 = vmatpush1.msra.mxu0 %v634
        %673 = vmatprep.subr.mxu0 0.0
        %674 = vmatpush1.msra.mxu0 %v633
        %675 = vmatprep.subr.mxu0 0.0
        %676 = vmatpush1.msra.mxu0 %v632
        %677 = vmatprep.subr.mxu0 0.0
        %678 = vmatpush1.msra.mxu0 %v631
        %679 = vmatprep.subr.mxu0 0.0
        %680 = vmatpush2.msra.mxu0 0.0
        %681 = vmatprep.subr.mxu0 0.0
        %682 = vmatpush2.msra.mxu0 0.0
        %683 = vmatprep.subr.mxu0 0.0
        %684 = vmatpush2.msra.mxu0 0.0
        %685 = vmatprep.subr.mxu0 0.0
        %686 = vmatpush2.msra.mxu0 0.0
        %687 = vmatprep.subr.mxu0 0.0
        %688 = vmatpush2.msra.mxu0 0.0
        %689 = vmatprep.subr.mxu0 0.0
        %690 = vmatpush2.msra.mxu0 0.0
        %691 = vmatprep.subr.mxu0 0.0
        %692 = vmatpush2.msra.mxu0 0.0
        %693 = vmatprep.subr.mxu0 0.0
        %694 = vmatpush2.msra.mxu0 0.0
        %695 = vmatprep.subr.mxu0 0.0
        %696 = vmatpush2.msra.mxu0 0.0
        %697 = vmatprep.subr.mxu0 0.0
        %698 = vmatpush2.msra.mxu0 0.0
        %699 = vmatprep.subr.mxu0 0.0
        %700 = vmatpush2.msra.mxu0 0.0
        %701 = vmatprep.subr.mxu0 0.0
        %702 = vmatpush2.msra.mxu0 0.0
        %703 = vmatprep.subr.mxu0 0.0
        %704 = vmatpush2.msra.mxu0 0.0
        %705 = vmatprep.subr.mxu0 0.0
        %706 = vmatpush2.msra.mxu0 0.0
        %707 = vmatprep.subr.mxu0 0.0
        %708 = vmatpush2.msra.mxu0 0.0
        %709 = vmatprep.subr.mxu0 0.0
        %710 = vmatpush2.msra.mxu0 0.0
        %711 = vmatprep.mubr.f32.mxu0 0.0
        %712 = vmatmul.mubr.f32.gmra.mxu0 %v338
        %v713 = vpop.f32.mrf.mxu0
        %v714 = vadd.f32 0.0, %v713
        %v715 = vpop.f32.mrf.mxu0
        %716 = vdwg.mxu0
        %v717 = vld [vmem:[%s6] sm:$0xff]
        %v718 = vld [vmem:[%s6 + $0x8] sm:$0xff]
        %v719 = vld [vmem:[%s6 + $0x10] sm:$0xff]
        %v720 = vld [vmem:[%s6 + $0x18] sm:$0xff]
        %v721 = vld [vmem:[%s6 + $0x20] sm:$0xff]
        %v722 = vld [vmem:[%s6 + $0x28] sm:$0xff]
        %v723 = vld [vmem:[%s6 + $0x30] sm:$0xff]
        %v724 = vld [vmem:[%s6 + $0x38] sm:$0xff]
        %v725 = vmul.f32 %v517, %v338
        %v726 = vld [vmem:[%s7] sm:$0x1]
        %v728 = vlaneseq
        %v729 = vshrl.u32 %v728, 7
        %v730 = vsub.s32 0, %v729
        %v731 = vrot.slane %v726, %v730
        %v733 = vmul.f32 %v338, %v731
        %v734 = vld [vmem:[#allocation2] sm:$0xff]
        %v735 = vld [vmem:[#allocation2 + $0x8] sm:$0xff]
        %v736 = vld [vmem:[#allocation2 + $0x10] sm:$0xff]
        %v737 = vld [vmem:[#allocation2 + $0x18] sm:$0xff]
        %v738 = vld [vmem:[#allocation2 + $0x20] sm:$0xff]
        %v739 = vld [vmem:[#allocation2 + $0x28] sm:$0xff]
        %v740 = vld [vmem:[#allocation2 + $0x30] sm:$0xff]
        %v741 = vld [vmem:[#allocation2 + $0x38] sm:$0xff]
        %v742 = vlaneseq
        %v743 = vshrl.u32 %v742, 7
        %v744 = vsub.s32 0, %v743
        %v745 = vrot.slane %v517, %v744
        %v746 = vmul.f32 %v717, %v745
        %v747 = vmul.f32 %v718, %v745
        %v748 = vmul.f32 %v719, %v745
        %v749 = vmul.f32 %v720, %v745
        %v750 = vmul.f32 %v721, %v745
        %v751 = vmul.f32 %v722, %v745
        %v752 = vmul.f32 %v723, %v745
        %v753 = vmul.f32 %v724, %v745
        %v754 = vmul.f32 %v746, 1.442695
        %v755 = vpow.pop %v754
        %v756 = vmul.f32 %v747, 1.442695
        %v757 = vpow.pop %v756
        %v758 = vmul.f32 %v748, 1.442695
        %v759 = vpow.pop %v758
        %v760 = vmul.f32 %v749, 1.442695
        %v761 = vpow.pop %v760
        %v762 = vmul.f32 %v750, 1.442695
        %v763 = vpow.pop %v762
        %v764 = vmul.f32 %v751, 1.442695
        %v765 = vpow.pop %v764
        %v766 = vmul.f32 %v752, 1.442695
        %v767 = vpow.pop %v766
        %v768 = vmul.f32 %v753, 1.442695
        %v769 = vpow.pop %v768
        %v770 = vmul.f32 %v755, %v734
        %v771 = vmul.f32 %v757, %v735
        %v772 = vmul.f32 %v759, %v736
        %v773 = vmul.f32 %v761, %v737
        %v774 = vmul.f32 %v763, %v738
        %v775 = vmul.f32 %v765, %v739
        %v776 = vmul.f32 %v767, %v740
        %v777 = vmul.f32 %v769, %v741
        %779 = vset.pattern.permute.xlu0 0
        %780 = vperm.xlu0 %779, %v593
        %v781 = vpop.permute.xlu0 %780
        %784 = vset.pattern.permute.xlu0 0
        %785 = vperm.xlu0 %784, %v598
        %v786 = vpop.permute.xlu0 %785
        %789 = vset.pattern.permute.xlu0 0
        %790 = vperm.xlu0 %789, %v603
        %v791 = vpop.permute.xlu0 %790
        %794 = vset.pattern.permute.xlu0 0
        %795 = vperm.xlu0 %794, %v608
        %v796 = vpop.permute.xlu0 %795
        %799 = vset.pattern.permute.xlu0 0
        %800 = vperm.xlu0 %799, %v613
        %v801 = vpop.permute.xlu0 %800
        %804 = vset.pattern.permute.xlu0 0
        %805 = vperm.xlu0 %804, %v618
        %v806 = vpop.permute.xlu0 %805
        %809 = vset.pattern.permute.xlu0 0
        %810 = vperm.xlu0 %809, %v623
        %v811 = vpop.permute.xlu0 %810
        %814 = vset.pattern.permute.xlu0 0
        %815 = vperm.xlu0 %814, %v628
        %v816 = vpop.permute.xlu0 %815
        %v818 = vlaneseq
        %v819 = vshrl.u32 %v818, 7
        %v820 = vsub.s32 0, %v819
        %v821 = vrot.slane %v725, %v820
        %v822 = vmul.f32 %v781, %v821
        %v823 = vmul.f32 %v786, %v821
        %v824 = vmul.f32 %v791, %v821
        %v825 = vmul.f32 %v796, %v821
        %v826 = vmul.f32 %v801, %v821
        %v827 = vmul.f32 %v806, %v821
        %v828 = vmul.f32 %v811, %v821
        %v829 = vmul.f32 %v816, %v821
        %v830 = vadd.f32 %v770, %v822
        %v831 = vadd.f32 %v771, %v823
        %v832 = vadd.f32 %v772, %v824
        %v833 = vadd.f32 %v773, %v825
        %v834 = vadd.f32 %v774, %v826
        %v835 = vadd.f32 %v775, %v827
        %v836 = vadd.f32 %v776, %v828
        %v837 = vadd.f32 %v777, %v829
        %vm838 = vcmask 523264
        %v840 = vsel %vm838, %v714, 0
        %842 = vmatprep.subr.mxu0 0.0
        %843 = vmatpush1.msra.mxu0 0.0
        %844 = vmatprep.subr.mxu0 0.0
        %845 = vmatpush1.msra.mxu0 0.0
        %846 = vmatprep.subr.mxu0 0.0
        %847 = vmatpush1.msra.mxu0 0.0
        %848 = vmatprep.subr.mxu0 0.0
        %849 = vmatpush1.msra.mxu0 0.0
        %850 = vmatprep.subr.mxu0 0.0
        %851 = vmatpush1.msra.mxu0 0.0
        %852 = vmatprep.subr.mxu0 0.0
        %853 = vmatpush1.msra.mxu0 0.0
        %854 = vmatprep.subr.mxu0 0.0
        %855 = vmatpush1.msra.mxu0 0.0
        %856 = vmatprep.subr.mxu0 0.0
        %857 = vmatpush1.msra.mxu0 0.0
        %858 = vmatprep.subr.mxu0 0.0
        %859 = vmatpush1.msra.mxu0 %v837
        %860 = vmatprep.subr.mxu0 0.0
        %861 = vmatpush1.msra.mxu0 %v836
        %862 = vmatprep.subr.mxu0 0.0
        %863 = vmatpush1.msra.mxu0 %v835
        %864 = vmatprep.subr.mxu0 0.0
        %865 = vmatpush1.msra.mxu0 %v834
        %866 = vmatprep.subr.mxu0 0.0
        %867 = vmatpush1.msra.mxu0 %v833
        %868 = vmatprep.subr.mxu0 0.0
        %869 = vmatpush1.msra.mxu0 %v832
        %870 = vmatprep.subr.mxu0 0.0
        %871 = vmatpush1.msra.mxu0 %v831
        %872 = vmatprep.subr.mxu0 0.0
        %873 = vmatpush1.msra.mxu0 %v830
        %874 = vmatprep.subr.mxu0 0.0
        %875 = vmatpush2.msra.mxu0 0.0
        %876 = vmatprep.subr.mxu0 0.0
        %877 = vmatpush2.msra.mxu0 0.0
        %878 = vmatprep.subr.mxu0 0.0
        %879 = vmatpush2.msra.mxu0 0.0
        %880 = vmatprep.subr.mxu0 0.0
        %881 = vmatpush2.msra.mxu0 0.0
        %882 = vmatprep.subr.mxu0 0.0
        %883 = vmatpush2.msra.mxu0 0.0
        %884 = vmatprep.subr.mxu0 0.0
        %885 = vmatpush2.msra.mxu0 0.0
        %886 = vmatprep.subr.mxu0 0.0
        %887 = vmatpush2.msra.mxu0 0.0
        %888 = vmatprep.subr.mxu0 0.0
        %889 = vmatpush2.msra.mxu0 0.0
        %890 = vmatprep.subr.mxu0 0.0
        %891 = vmatpush2.msra.mxu0 0.0
        %892 = vmatprep.subr.mxu0 0.0
        %893 = vmatpush2.msra.mxu0 0.0
        %894 = vmatprep.subr.mxu0 0.0
        %895 = vmatpush2.msra.mxu0 0.0
        %896 = vmatprep.subr.mxu0 0.0
        %897 = vmatpush2.msra.mxu0 0.0
        %898 = vmatprep.subr.mxu0 0.0
        %899 = vmatpush2.msra.mxu0 0.0
        %900 = vmatprep.subr.mxu0 0.0
        %901 = vmatpush2.msra.mxu0 0.0
        %902 = vmatprep.subr.mxu0 0.0
        %903 = vmatpush2.msra.mxu0 0.0
        %904 = vmatprep.subr.mxu0 0.0
        %905 = vmatpush2.msra.mxu0 0.0
        %906 = vmatprep.mubr.f32.mxu0 0.0
        %907 = vmatmul.mubr.f32.gmra.mxu0 %v840
        %v908 = vpop.f32.mrf.mxu0
        %v909 = vadd.f32 %v733, %v908
        %v910 = vpop.f32.mrf.mxu0
        %911 = vdwg.mxu0
        %912 = vst [vmem:[%s318] sm:$0x1] %v909
        %v913 = vlaneseq
        %v914 = vshrl.u32 %v913, 7
        %v915 = vsub.s32 1, %v914
        %v916 = vrot.slane %v517, %v915
        %v917 = vmul.f32 %v717, %v916
        %v918 = vmul.f32 %v718, %v916
        %v919 = vmul.f32 %v719, %v916
        %v920 = vmul.f32 %v720, %v916
        %v921 = vmul.f32 %v721, %v916
        %v922 = vmul.f32 %v722, %v916
        %v923 = vmul.f32 %v723, %v916
        %v924 = vmul.f32 %v724, %v916
        %v925 = vmul.f32 %v917, 1.442695
        %v926 = vpow.pop %v925
        %v927 = vmul.f32 %v918, 1.442695
        %v928 = vpow.pop %v927
        %v929 = vmul.f32 %v919, 1.442695
        %v930 = vpow.pop %v929
        %v931 = vmul.f32 %v920, 1.442695
        %v932 = vpow.pop %v931
        %v933 = vmul.f32 %v921, 1.442695
        %v934 = vpow.pop %v933
        %v935 = vmul.f32 %v922, 1.442695
        %v936 = vpow.pop %v935
        %v937 = vmul.f32 %v923, 1.442695
        %v938 = vpow.pop %v937
        %v939 = vmul.f32 %v924, 1.442695
        %v940 = vpow.pop %v939
        %v941 = vmul.f32 %v926, %v830
        %v942 = vmul.f32 %v928, %v831
        %v943 = vmul.f32 %v930, %v832
        %v944 = vmul.f32 %v932, %v833
        %v945 = vmul.f32 %v934, %v834
        %v946 = vmul.f32 %v936, %v835
        %v947 = vmul.f32 %v938, %v836
        %v948 = vmul.f32 %v940, %v837
        %949 = vset.pattern.permute.xlu0 1
        %950 = vperm.xlu0 %949, %v593
        %v951 = vpop.permute.xlu0 %950
        %953 = vset.pattern.permute.xlu0 1
        %954 = vperm.xlu0 %953, %v598
        %v955 = vpop.permute.xlu0 %954
        %957 = vset.pattern.permute.xlu0 1
        %958 = vperm.xlu0 %957, %v603
        %v959 = vpop.permute.xlu0 %958
        %961 = vset.pattern.permute.xlu0 1
        %962 = vperm.xlu0 %961, %v608
        %v963 = vpop.permute.xlu0 %962
        %965 = vset.pattern.permute.xlu0 1
        %966 = vperm.xlu0 %965, %v613
        %v967 = vpop.permute.xlu0 %966
        %969 = vset.pattern.permute.xlu0 1
        %970 = vperm.xlu0 %969, %v618
        %v971 = vpop.permute.xlu0 %970
        %973 = vset.pattern.permute.xlu0 1
        %974 = vperm.xlu0 %973, %v623
        %v975 = vpop.permute.xlu0 %974
        %977 = vset.pattern.permute.xlu0 1
        %978 = vperm.xlu0 %977, %v628
        %v979 = vpop.permute.xlu0 %978
        %v981 = vlaneseq
        %v982 = vshrl.u32 %v981, 7
        %v983 = vsub.s32 1, %v982
        %v984 = vrot.slane %v725, %v983
        %v985 = vmul.f32 %v951, %v984
        %v986 = vmul.f32 %v955, %v984
        %v987 = vmul.f32 %v959, %v984
        %v988 = vmul.f32 %v963, %v984
        %v989 = vmul.f32 %v967, %v984
        %v990 = vmul.f32 %v971, %v984
        %v991 = vmul.f32 %v975, %v984
        %v992 = vmul.f32 %v979, %v984
        %v993 = vadd.f32 %v941, %v985
        %v994 = vadd.f32 %v942, %v986
        %v995 = vadd.f32 %v943, %v987
        %v996 = vadd.f32 %v944, %v988
        %v997 = vadd.f32 %v945, %v989
        %v998 = vadd.f32 %v946, %v990
        %v999 = vadd.f32 %v947, %v991
        %v1000 = vadd.f32 %v948, %v992
        %v1001 = vrot.slane %v714, 1
        %v1003 = vrot.slane %v733, 1
        %v1005 = vsel %vm838, %v1001, 0
        %1007 = vmatprep.subr.mxu0 0.0
        %1008 = vmatpush1.msra.mxu0 0.0
        %1009 = vmatprep.subr.mxu0 0.0
        %1010 = vmatpush1.msra.mxu0 0.0
        %1011 = vmatprep.subr.mxu0 0.0
        %1012 = vmatpush1.msra.mxu0 0.0
        %1013 = vmatprep.subr.mxu0 0.0
        %1014 = vmatpush1.msra.mxu0 0.0
        %1015 = vmatprep.subr.mxu0 0.0
        %1016 = vmatpush1.msra.mxu0 0.0
        %1017 = vmatprep.subr.mxu0 0.0
        %1018 = vmatpush1.msra.mxu0 0.0
        %1019 = vmatprep.subr.mxu0 0.0
        %1020 = vmatpush1.msra.mxu0 0.0
        %1021 = vmatprep.subr.mxu0 0.0
        %1022 = vmatpush1.msra.mxu0 0.0
        %1023 = vmatprep.subr.mxu0 0.0
        %1024 = vmatpush1.msra.mxu0 %v1000
        %1025 = vmatprep.subr.mxu0 0.0
        %1026 = vmatpush1.msra.mxu0 %v999
        %1027 = vmatprep.subr.mxu0 0.0
        %1028 = vmatpush1.msra.mxu0 %v998
        %1029 = vmatprep.subr.mxu0 0.0
        %1030 = vmatpush1.msra.mxu0 %v997
        %1031 = vmatprep.subr.mxu0 0.0
        %1032 = vmatpush1.msra.mxu0 %v996
        %1033 = vmatprep.subr.mxu0 0.0
        %1034 = vmatpush1.msra.mxu0 %v995
        %1035 = vmatprep.subr.mxu0 0.0
        %1036 = vmatpush1.msra.mxu0 %v994
        %1037 = vmatprep.subr.mxu0 0.0
        %1038 = vmatpush1.msra.mxu0 %v993
        %1039 = vmatprep.subr.mxu0 0.0
        %1040 = vmatpush2.msra.mxu0 0.0
        %1041 = vmatprep.subr.mxu0 0.0
        %1042 = vmatpush2.msra.mxu0 0.0
        %1043 = vmatprep.subr.mxu0 0.0
        %1044 = vmatpush2.msra.mxu0 0.0
        %1045 = vmatprep.subr.mxu0 0.0
        %1046 = vmatpush2.msra.mxu0 0.0
        %1047 = vmatprep.subr.mxu0 0.0
        %1048 = vmatpush2.msra.mxu0 0.0
        %1049 = vmatprep.subr.mxu0 0.0
        %1050 = vmatpush2.msra.mxu0 0.0
        %1051 = vmatprep.subr.mxu0 0.0
        %1052 = vmatpush2.msra.mxu0 0.0
        %1053 = vmatprep.subr.mxu0 0.0
        %1054 = vmatpush2.msra.mxu0 0.0
        %1055 = vmatprep.subr.mxu0 0.0
        %1056 = vmatpush2.msra.mxu0 0.0
        %1057 = vmatprep.subr.mxu0 0.0
        %1058 = vmatpush2.msra.mxu0 0.0
        %1059 = vmatprep.subr.mxu0 0.0
        %1060 = vmatpush2.msra.mxu0 0.0
        %1061 = vmatprep.subr.mxu0 0.0
        %1062 = vmatpush2.msra.mxu0 0.0
        %1063 = vmatprep.subr.mxu0 0.0
        %1064 = vmatpush2.msra.mxu0 0.0
        %1065 = vmatprep.subr.mxu0 0.0
        %1066 = vmatpush2.msra.mxu0 0.0
        %1067 = vmatprep.subr.mxu0 0.0
        %1068 = vmatpush2.msra.mxu0 0.0
        %1069 = vmatprep.subr.mxu0 0.0
        %1070 = vmatpush2.msra.mxu0 0.0
        %1071 = vmatprep.mubr.f32.mxu0 0.0
        %1072 = vmatmul.mubr.f32.gmra.mxu0 %v1005
        %v1073 = vpop.f32.mrf.mxu0
        %v1074 = vadd.f32 %v1003, %v1073
        %v1075 = vpop.f32.mrf.mxu0
        %1076 = vdwg.mxu0
        %1077 = vst [vmem:[%s318 + $0x1] sm:$0x1] %v1074
        %v1078 = vlaneseq
        %v1079 = vshrl.u32 %v1078, 7
        %v1080 = vsub.s32 2, %v1079
        %v1081 = vrot.slane %v517, %v1080
        %v1082 = vmul.f32 %v717, %v1081
        %v1083 = vmul.f32 %v718, %v1081
        %v1084 = vmul.f32 %v719, %v1081
        %v1085 = vmul.f32 %v720, %v1081
        %v1086 = vmul.f32 %v721, %v1081
        %v1087 = vmul.f32 %v722, %v1081
        %v1088 = vmul.f32 %v723, %v1081
        %v1089 = vmul.f32 %v724, %v1081
        %v1090 = vmul.f32 %v1082, 1.442695
        %v1091 = vpow.pop %v1090
        %v1092 = vmul.f32 %v1083, 1.442695
        %v1093 = vpow.pop %v1092
        %v1094 = vmul.f32 %v1084, 1.442695
        %v1095 = vpow.pop %v1094
        %v1096 = vmul.f32 %v1085, 1.442695
        %v1097 = vpow.pop %v1096
        %v1098 = vmul.f32 %v1086, 1.442695
        %v1099 = vpow.pop %v1098
        %v1100 = vmul.f32 %v1087, 1.442695
        %v1101 = vpow.pop %v1100
        %v1102 = vmul.f32 %v1088, 1.442695
        %v1103 = vpow.pop %v1102
        %v1104 = vmul.f32 %v1089, 1.442695
        %v1105 = vpow.pop %v1104
        %v1106 = vmul.f32 %v1091, %v993
        %v1107 = vmul.f32 %v1093, %v994
        %v1108 = vmul.f32 %v1095, %v995
        %v1109 = vmul.f32 %v1097, %v996
        %v1110 = vmul.f32 %v1099, %v997
        %v1111 = vmul.f32 %v1101, %v998
        %v1112 = vmul.f32 %v1103, %v999
        %v1113 = vmul.f32 %v1105, %v1000
        %1114 = vset.pattern.permute.xlu0 2
        %1115 = vperm.xlu0 %1114, %v593
        %v1116 = vpop.permute.xlu0 %1115
        %1118 = vset.pattern.permute.xlu0 2
        %1119 = vperm.xlu0 %1118, %v598
        %v1120 = vpop.permute.xlu0 %1119
        %1122 = vset.pattern.permute.xlu0 2
        %1123 = vperm.xlu0 %1122, %v603
        %v1124 = vpop.permute.xlu0 %1123
        %1126 = vset.pattern.permute.xlu0 2
        %1127 = vperm.xlu0 %1126, %v608
        %v1128 = vpop.permute.xlu0 %1127
        %1130 = vset.pattern.permute.xlu0 2
        %1131 = vperm.xlu0 %1130, %v613
        %v1132 = vpop.permute.xlu0 %1131
        %1134 = vset.pattern.permute.xlu0 2
        %1135 = vperm.xlu0 %1134, %v618
        %v1136 = vpop.permute.xlu0 %1135
        %1138 = vset.pattern.permute.xlu0 2
        %1139 = vperm.xlu0 %1138, %v623
        %v1140 = vpop.permute.xlu0 %1139
        %1142 = vset.pattern.permute.xlu0 2
        %1143 = vperm.xlu0 %1142, %v628
        %v1144 = vpop.permute.xlu0 %1143
        %v1146 = vlaneseq
        %v1147 = vshrl.u32 %v1146, 7
        %v1148 = vsub.s32 2, %v1147
        %v1149 = vrot.slane %v725, %v1148
        %v1150 = vmul.f32 %v1116, %v1149
        %v1151 = vmul.f32 %v1120, %v1149
        %v1152 = vmul.f32 %v1124, %v1149
        %v1153 = vmul.f32 %v1128, %v1149
        %v1154 = vmul.f32 %v1132, %v1149
        %v1155 = vmul.f32 %v1136, %v1149
        %v1156 = vmul.f32 %v1140, %v1149
        %v1157 = vmul.f32 %v1144, %v1149
        %v1158 = vadd.f32 %v1106, %v1150
        %v1159 = vadd.f32 %v1107, %v1151
        %v1160 = vadd.f32 %v1108, %v1152
        %v1161 = vadd.f32 %v1109, %v1153
        %v1162 = vadd.f32 %v1110, %v1154
        %v1163 = vadd.f32 %v1111, %v1155
        %v1164 = vadd.f32 %v1112, %v1156
        %v1165 = vadd.f32 %v1113, %v1157
        %v1166 = vrot.slane %v714, 2
        %v1167 = vrot.slane %v733, 2
        %v1169 = vsel %vm838, %v1166, 0
        %1171 = vmatprep.subr.mxu0 0.0
        %1172 = vmatpush1.msra.mxu0 0.0
        %1173 = vmatprep.subr.mxu0 0.0
        %1174 = vmatpush1.msra.mxu0 0.0
        %1175 = vmatprep.subr.mxu0 0.0
        %1176 = vmatpush1.msra.mxu0 0.0
        %1177 = vmatprep.subr.mxu0 0.0
        %1178 = vmatpush1.msra.mxu0 0.0
        %1179 = vmatprep.subr.mxu0 0.0
        %1180 = vmatpush1.msra.mxu0 0.0
        %1181 = vmatprep.subr.mxu0 0.0
        %1182 = vmatpush1.msra.mxu0 0.0
        %1183 = vmatprep.subr.mxu0 0.0
        %1184 = vmatpush1.msra.mxu0 0.0
        %1185 = vmatprep.subr.mxu0 0.0
        %1186 = vmatpush1.msra.mxu0 0.0
        %1187 = vmatprep.subr.mxu0 0.0
        %1188 = vmatpush1.msra.mxu0 %v1165
        %1189 = vmatprep.subr.mxu0 0.0
        %1190 = vmatpush1.msra.mxu0 %v1164
        %1191 = vmatprep.subr.mxu0 0.0
        %1192 = vmatpush1.msra.mxu0 %v1163
        %1193 = vmatprep.subr.mxu0 0.0
        %1194 = vmatpush1.msra.mxu0 %v1162
        %1195 = vmatprep.subr.mxu0 0.0
        %1196 = vmatpush1.msra.mxu0 %v1161
        %1197 = vmatprep.subr.mxu0 0.0
        %1198 = vmatpush1.msra.mxu0 %v1160
        %1199 = vmatprep.subr.mxu0 0.0
        %1200 = vmatpush1.msra.mxu0 %v1159
        %1201 = vmatprep.subr.mxu0 0.0
        %1202 = vmatpush1.msra.mxu0 %v1158
        %1203 = vmatprep.subr.mxu0 0.0
        %1204 = vmatpush2.msra.mxu0 0.0
        %1205 = vmatprep.subr.mxu0 0.0
        %1206 = vmatpush2.msra.mxu0 0.0
        %1207 = vmatprep.subr.mxu0 0.0
        %1208 = vmatpush2.msra.mxu0 0.0
        %1209 = vmatprep.subr.mxu0 0.0
        %1210 = vmatpush2.msra.mxu0 0.0
        %1211 = vmatprep.subr.mxu0 0.0
        %1212 = vmatpush2.msra.mxu0 0.0
        %1213 = vmatprep.subr.mxu0 0.0
        %1214 = vmatpush2.msra.mxu0 0.0
        %1215 = vmatprep.subr.mxu0 0.0
        %1216 = vmatpush2.msra.mxu0 0.0
        %1217 = vmatprep.subr.mxu0 0.0
        %1218 = vmatpush2.msra.mxu0 0.0
        %1219 = vmatprep.subr.mxu0 0.0
        %1220 = vmatpush2.msra.mxu0 0.0
        %1221 = vmatprep.subr.mxu0 0.0
        %1222 = vmatpush2.msra.mxu0 0.0
        %1223 = vmatprep.subr.mxu0 0.0
        %1224 = vmatpush2.msra.mxu0 0.0
        %1225 = vmatprep.subr.mxu0 0.0
        %1226 = vmatpush2.msra.mxu0 0.0
        %1227 = vmatprep.subr.mxu0 0.0
        %1228 = vmatpush2.msra.mxu0 0.0
        %1229 = vmatprep.subr.mxu0 0.0
        %1230 = vmatpush2.msra.mxu0 0.0
        %1231 = vmatprep.subr.mxu0 0.0
        %1232 = vmatpush2.msra.mxu0 0.0
        %1233 = vmatprep.subr.mxu0 0.0
        %1234 = vmatpush2.msra.mxu0 0.0
        %1235 = vmatprep.mubr.f32.mxu0 0.0
        %1236 = vmatmul.mubr.f32.gmra.mxu0 %v1169
        %v1237 = vpop.f32.mrf.mxu0
        %v1238 = vadd.f32 %v1167, %v1237
        %v1239 = vpop.f32.mrf.mxu0
        %1240 = vdwg.mxu0
        %1241 = vst [vmem:[%s318 + $0x2] sm:$0x1] %v1238
        %v1242 = vlaneseq
        %v1243 = vshrl.u32 %v1242, 7
        %v1244 = vsub.s32 3, %v1243
        %v1245 = vrot.slane %v517, %v1244
        %v1246 = vmul.f32 %v717, %v1245
        %v1247 = vmul.f32 %v718, %v1245
        %v1248 = vmul.f32 %v719, %v1245
        %v1249 = vmul.f32 %v720, %v1245
        %v1250 = vmul.f32 %v721, %v1245
        %v1251 = vmul.f32 %v722, %v1245
        %v1252 = vmul.f32 %v723, %v1245
        %v1253 = vmul.f32 %v724, %v1245
        %v1254 = vmul.f32 %v1246, 1.442695
        %v1255 = vpow.pop %v1254
        %v1256 = vmul.f32 %v1247, 1.442695
        %v1257 = vpow.pop %v1256
        %v1258 = vmul.f32 %v1248, 1.442695
        %v1259 = vpow.pop %v1258
        %v1260 = vmul.f32 %v1249, 1.442695
        %v1261 = vpow.pop %v1260
        %v1262 = vmul.f32 %v1250, 1.442695
        %v1263 = vpow.pop %v1262
        %v1264 = vmul.f32 %v1251, 1.442695
        %v1265 = vpow.pop %v1264
        %v1266 = vmul.f32 %v1252, 1.442695
        %v1267 = vpow.pop %v1266
        %v1268 = vmul.f32 %v1253, 1.442695
        %v1269 = vpow.pop %v1268
        %v1270 = vmul.f32 %v1255, %v1158
        %v1271 = vmul.f32 %v1257, %v1159
        %v1272 = vmul.f32 %v1259, %v1160
        %v1273 = vmul.f32 %v1261, %v1161
        %v1274 = vmul.f32 %v1263, %v1162
        %v1275 = vmul.f32 %v1265, %v1163
        %v1276 = vmul.f32 %v1267, %v1164
        %v1277 = vmul.f32 %v1269, %v1165
        %1278 = vset.pattern.permute.xlu0 3
        %1279 = vperm.xlu0 %1278, %v593
        %v1280 = vpop.permute.xlu0 %1279
        %1282 = vset.pattern.permute.xlu0 3
        %1283 = vperm.xlu0 %1282, %v598
        %v1284 = vpop.permute.xlu0 %1283
        %1286 = vset.pattern.permute.xlu0 3
        %1287 = vperm.xlu0 %1286, %v603
        %v1288 = vpop.permute.xlu0 %1287
        %1290 = vset.pattern.permute.xlu0 3
        %1291 = vperm.xlu0 %1290, %v608
        %v1292 = vpop.permute.xlu0 %1291
        %1294 = vset.pattern.permute.xlu0 3
        %1295 = vperm.xlu0 %1294, %v613
        %v1296 = vpop.permute.xlu0 %1295
        %1298 = vset.pattern.permute.xlu0 3
        %1299 = vperm.xlu0 %1298, %v618
        %v1300 = vpop.permute.xlu0 %1299
        %1302 = vset.pattern.permute.xlu0 3
        %1303 = vperm.xlu0 %1302, %v623
        %v1304 = vpop.permute.xlu0 %1303
        %1306 = vset.pattern.permute.xlu0 3
        %1307 = vperm.xlu0 %1306, %v628
        %v1308 = vpop.permute.xlu0 %1307
        %v1310 = vlaneseq
        %v1311 = vshrl.u32 %v1310, 7
        %v1312 = vsub.s32 3, %v1311
        %v1313 = vrot.slane %v725, %v1312
        %v1314 = vmul.f32 %v1280, %v1313
        %v1315 = vmul.f32 %v1284, %v1313
        %v1316 = vmul.f32 %v1288, %v1313
        %v1317 = vmul.f32 %v1292, %v1313
        %v1318 = vmul.f32 %v1296, %v1313
        %v1319 = vmul.f32 %v1300, %v1313
        %v1320 = vmul.f32 %v1304, %v1313
        %v1321 = vmul.f32 %v1308, %v1313
        %v1322 = vadd.f32 %v1270, %v1314
        %v1323 = vadd.f32 %v1271, %v1315
        %v1324 = vadd.f32 %v1272, %v1316
        %v1325 = vadd.f32 %v1273, %v1317
        %v1326 = vadd.f32 %v1274, %v1318
        %v1327 = vadd.f32 %v1275, %v1319
        %v1328 = vadd.f32 %v1276, %v1320
        %v1329 = vadd.f32 %v1277, %v1321
        %v1330 = vrot.slane %v714, 3
        %v1331 = vrot.slane %v733, 3
        %v1333 = vsel %vm838, %v1330, 0
        %1335 = vmatprep.subr.mxu0 0.0
        %1336 = vmatpush1.msra.mxu0 0.0
        %1337 = vmatprep.subr.mxu0 0.0
        %1338 = vmatpush1.msra.mxu0 0.0
        %1339 = vmatprep.subr.mxu0 0.0
        %1340 = vmatpush1.msra.mxu0 0.0
        %1341 = vmatprep.subr.mxu0 0.0
        %1342 = vmatpush1.msra.mxu0 0.0
        %1343 = vmatprep.subr.mxu0 0.0
        %1344 = vmatpush1.msra.mxu0 0.0
        %1345 = vmatprep.subr.mxu0 0.0
        %1346 = vmatpush1.msra.mxu0 0.0
        %1347 = vmatprep.subr.mxu0 0.0
        %1348 = vmatpush1.msra.mxu0 0.0
        %1349 = vmatprep.subr.mxu0 0.0
        %1350 = vmatpush1.msra.mxu0 0.0
        %1351 = vmatprep.subr.mxu0 0.0
        %1352 = vmatpush1.msra.mxu0 %v1329
        %1353 = vmatprep.subr.mxu0 0.0
        %1354 = vmatpush1.msra.mxu0 %v1328
        %1355 = vmatprep.subr.mxu0 0.0
        %1356 = vmatpush1.msra.mxu0 %v1327
        %1357 = vmatprep.subr.mxu0 0.0
        %1358 = vmatpush1.msra.mxu0 %v1326
        %1359 = vmatprep.subr.mxu0 0.0
        %1360 = vmatpush1.msra.mxu0 %v1325
        %1361 = vmatprep.subr.mxu0 0.0
        %1362 = vmatpush1.msra.mxu0 %v1324
        %1363 = vmatprep.subr.mxu0 0.0
        %1364 = vmatpush1.msra.mxu0 %v1323
        %1365 = vmatprep.subr.mxu0 0.0
        %1366 = vmatpush1.msra.mxu0 %v1322
        %1367 = vmatprep.subr.mxu0 0.0
        %1368 = vmatpush2.msra.mxu0 0.0
        %1369 = vmatprep.subr.mxu0 0.0
        %1370 = vmatpush2.msra.mxu0 0.0
        %1371 = vmatprep.subr.mxu0 0.0
        %1372 = vmatpush2.msra.mxu0 0.0
        %1373 = vmatprep.subr.mxu0 0.0
        %1374 = vmatpush2.msra.mxu0 0.0
        %1375 = vmatprep.subr.mxu0 0.0
        %1376 = vmatpush2.msra.mxu0 0.0
        %1377 = vmatprep.subr.mxu0 0.0
        %1378 = vmatpush2.msra.mxu0 0.0
        %1379 = vmatprep.subr.mxu0 0.0
        %1380 = vmatpush2.msra.mxu0 0.0
        %1381 = vmatprep.subr.mxu0 0.0
        %1382 = vmatpush2.msra.mxu0 0.0
        %1383 = vmatprep.subr.mxu0 0.0
        %1384 = vmatpush2.msra.mxu0 0.0
        %1385 = vmatprep.subr.mxu0 0.0
        %1386 = vmatpush2.msra.mxu0 0.0
        %1387 = vmatprep.subr.mxu0 0.0
        %1388 = vmatpush2.msra.mxu0 0.0
        %1389 = vmatprep.subr.mxu0 0.0
        %1390 = vmatpush2.msra.mxu0 0.0
        %1391 = vmatprep.subr.mxu0 0.0
        %1392 = vmatpush2.msra.mxu0 0.0
        %1393 = vmatprep.subr.mxu0 0.0
        %1394 = vmatpush2.msra.mxu0 0.0
        %1395 = vmatprep.subr.mxu0 0.0
        %1396 = vmatpush2.msra.mxu0 0.0
        %1397 = vmatprep.subr.mxu0 0.0
        %1398 = vmatpush2.msra.mxu0 0.0
        %1399 = vmatprep.mubr.f32.mxu0 0.0
        %1400 = vmatmul.mubr.f32.gmra.mxu0 %v1333
        %v1401 = vpop.f32.mrf.mxu0
        %v1402 = vadd.f32 %v1331, %v1401
        %v1403 = vpop.f32.mrf.mxu0
        %1404 = vdwg.mxu0
        %1405 = vst [vmem:[%s318 + $0x3] sm:$0x1] %v1402
        %v1406 = vlaneseq
        %v1407 = vshrl.u32 %v1406, 7
        %v1408 = vsub.s32 4, %v1407
        %v1409 = vrot.slane %v517, %v1408
        %v1410 = vmul.f32 %v717, %v1409
        %v1411 = vmul.f32 %v718, %v1409
        %v1412 = vmul.f32 %v719, %v1409
        %v1413 = vmul.f32 %v720, %v1409
        %v1414 = vmul.f32 %v721, %v1409
        %v1415 = vmul.f32 %v722, %v1409
        %v1416 = vmul.f32 %v723, %v1409
        %v1417 = vmul.f32 %v724, %v1409
        %v1418 = vmul.f32 %v1410, 1.442695
        %v1419 = vpow.pop %v1418
        %v1420 = vmul.f32 %v1411, 1.442695
        %v1421 = vpow.pop %v1420
        %v1422 = vmul.f32 %v1412, 1.442695
        %v1423 = vpow.pop %v1422
        %v1424 = vmul.f32 %v1413, 1.442695
        %v1425 = vpow.pop %v1424
        %v1426 = vmul.f32 %v1414, 1.442695
        %v1427 = vpow.pop %v1426
        %v1428 = vmul.f32 %v1415, 1.442695
        %v1429 = vpow.pop %v1428
        %v1430 = vmul.f32 %v1416, 1.442695
        %v1431 = vpow.pop %v1430
        %v1432 = vmul.f32 %v1417, 1.442695
        %v1433 = vpow.pop %v1432
        %v1434 = vmul.f32 %v1419, %v1322
        %v1435 = vmul.f32 %v1421, %v1323
        %v1436 = vmul.f32 %v1423, %v1324
        %v1437 = vmul.f32 %v1425, %v1325
        %v1438 = vmul.f32 %v1427, %v1326
        %v1439 = vmul.f32 %v1429, %v1327
        %v1440 = vmul.f32 %v1431, %v1328
        %v1441 = vmul.f32 %v1433, %v1329
        %1442 = vset.pattern.permute.xlu0 4
        %1443 = vperm.xlu0 %1442, %v593
        %v1444 = vpop.permute.xlu0 %1443
        %1446 = vset.pattern.permute.xlu0 4
        %1447 = vperm.xlu0 %1446, %v598
        %v1448 = vpop.permute.xlu0 %1447
        %1450 = vset.pattern.permute.xlu0 4
        %1451 = vperm.xlu0 %1450, %v603
        %v1452 = vpop.permute.xlu0 %1451
        %1454 = vset.pattern.permute.xlu0 4
        %1455 = vperm.xlu0 %1454, %v608
        %v1456 = vpop.permute.xlu0 %1455
        %1458 = vset.pattern.permute.xlu0 4
        %1459 = vperm.xlu0 %1458, %v613
        %v1460 = vpop.permute.xlu0 %1459
        %1462 = vset.pattern.permute.xlu0 4
        %1463 = vperm.xlu0 %1462, %v618
        %v1464 = vpop.permute.xlu0 %1463
        %1466 = vset.pattern.permute.xlu0 4
        %1467 = vperm.xlu0 %1466, %v623
        %v1468 = vpop.permute.xlu0 %1467
        %1470 = vset.pattern.permute.xlu0 4
        %1471 = vperm.xlu0 %1470, %v628
        %v1472 = vpop.permute.xlu0 %1471
        %v1474 = vlaneseq
        %v1475 = vshrl.u32 %v1474, 7
        %v1476 = vsub.s32 4, %v1475
        %v1477 = vrot.slane %v725, %v1476
        %v1478 = vmul.f32 %v1444, %v1477
        %v1479 = vmul.f32 %v1448, %v1477
        %v1480 = vmul.f32 %v1452, %v1477
        %v1481 = vmul.f32 %v1456, %v1477
        %v1482 = vmul.f32 %v1460, %v1477
        %v1483 = vmul.f32 %v1464, %v1477
        %v1484 = vmul.f32 %v1468, %v1477
        %v1485 = vmul.f32 %v1472, %v1477
        %v1486 = vadd.f32 %v1434, %v1478
        %v1487 = vadd.f32 %v1435, %v1479
        %v1488 = vadd.f32 %v1436, %v1480
        %v1489 = vadd.f32 %v1437, %v1481
        %v1490 = vadd.f32 %v1438, %v1482
        %v1491 = vadd.f32 %v1439, %v1483
        %v1492 = vadd.f32 %v1440, %v1484
        %v1493 = vadd.f32 %v1441, %v1485
        %v1494 = vrot.slane %v714, 4
        %v1495 = vrot.slane %v733, 4
        %v1497 = vsel %vm838, %v1494, 0
        %1499 = vmatprep.subr.mxu0 0.0
        %1500 = vmatpush1.msra.mxu0 0.0
        %1501 = vmatprep.subr.mxu0 0.0
        %1502 = vmatpush1.msra.mxu0 0.0
        %1503 = vmatprep.subr.mxu0 0.0
        %1504 = vmatpush1.msra.mxu0 0.0
        %1505 = vmatprep.subr.mxu0 0.0
        %1506 = vmatpush1.msra.mxu0 0.0
        %1507 = vmatprep.subr.mxu0 0.0
        %1508 = vmatpush1.msra.mxu0 0.0
        %1509 = vmatprep.subr.mxu0 0.0
        %1510 = vmatpush1.msra.mxu0 0.0
        %1511 = vmatprep.subr.mxu0 0.0
        %1512 = vmatpush1.msra.mxu0 0.0
        %1513 = vmatprep.subr.mxu0 0.0
        %1514 = vmatpush1.msra.mxu0 0.0
        %1515 = vmatprep.subr.mxu0 0.0
        %1516 = vmatpush1.msra.mxu0 %v1493
        %1517 = vmatprep.subr.mxu0 0.0
        %1518 = vmatpush1.msra.mxu0 %v1492
        %1519 = vmatprep.subr.mxu0 0.0
        %1520 = vmatpush1.msra.mxu0 %v1491
        %1521 = vmatprep.subr.mxu0 0.0
        %1522 = vmatpush1.msra.mxu0 %v1490
        %1523 = vmatprep.subr.mxu0 0.0
        %1524 = vmatpush1.msra.mxu0 %v1489
        %1525 = vmatprep.subr.mxu0 0.0
        %1526 = vmatpush1.msra.mxu0 %v1488
        %1527 = vmatprep.subr.mxu0 0.0
        %1528 = vmatpush1.msra.mxu0 %v1487
        %1529 = vmatprep.subr.mxu0 0.0
        %1530 = vmatpush1.msra.mxu0 %v1486
        %1531 = vmatprep.subr.mxu0 0.0
        %1532 = vmatpush2.msra.mxu0 0.0
        %1533 = vmatprep.subr.mxu0 0.0
        %1534 = vmatpush2.msra.mxu0 0.0
        %1535 = vmatprep.subr.mxu0 0.0
        %1536 = vmatpush2.msra.mxu0 0.0
        %1537 = vmatprep.subr.mxu0 0.0
        %1538 = vmatpush2.msra.mxu0 0.0
        %1539 = vmatprep.subr.mxu0 0.0
        %1540 = vmatpush2.msra.mxu0 0.0
        %1541 = vmatprep.subr.mxu0 0.0
        %1542 = vmatpush2.msra.mxu0 0.0
        %1543 = vmatprep.subr.mxu0 0.0
        %1544 = vmatpush2.msra.mxu0 0.0
        %1545 = vmatprep.subr.mxu0 0.0
        %1546 = vmatpush2.msra.mxu0 0.0
        %1547 = vmatprep.subr.mxu0 0.0
        %1548 = vmatpush2.msra.mxu0 0.0
        %1549 = vmatprep.subr.mxu0 0.0
        %1550 = vmatpush2.msra.mxu0 0.0
        %1551 = vmatprep.subr.mxu0 0.0
        %1552 = vmatpush2.msra.mxu0 0.0
        %1553 = vmatprep.subr.mxu0 0.0
        %1554 = vmatpush2.msra.mxu0 0.0
        %1555 = vmatprep.subr.mxu0 0.0
        %1556 = vmatpush2.msra.mxu0 0.0
        %1557 = vmatprep.subr.mxu0 0.0
        %1558 = vmatpush2.msra.mxu0 0.0
        %1559 = vmatprep.subr.mxu0 0.0
        %1560 = vmatpush2.msra.mxu0 0.0
        %1561 = vmatprep.subr.mxu0 0.0
        %1562 = vmatpush2.msra.mxu0 0.0
        %1563 = vmatprep.mubr.f32.mxu0 0.0
        %1564 = vmatmul.mubr.f32.gmra.mxu0 %v1497
        %v1565 = vpop.f32.mrf.mxu0
        %v1566 = vadd.f32 %v1495, %v1565
        %v1567 = vpop.f32.mrf.mxu0
        %1568 = vdwg.mxu0
        %1569 = vst [vmem:[%s318 + $0x4] sm:$0x1] %v1566
        %v1570 = vlaneseq
        %v1571 = vshrl.u32 %v1570, 7
        %v1572 = vsub.s32 5, %v1571
        %v1573 = vrot.slane %v517, %v1572
        %v1574 = vmul.f32 %v717, %v1573
        %v1575 = vmul.f32 %v718, %v1573
        %v1576 = vmul.f32 %v719, %v1573
        %v1577 = vmul.f32 %v720, %v1573
        %v1578 = vmul.f32 %v721, %v1573
        %v1579 = vmul.f32 %v722, %v1573
        %v1580 = vmul.f32 %v723, %v1573
        %v1581 = vmul.f32 %v724, %v1573
        %v1582 = vmul.f32 %v1574, 1.442695
        %v1583 = vpow.pop %v1582
        %v1584 = vmul.f32 %v1575, 1.442695
        %v1585 = vpow.pop %v1584
        %v1586 = vmul.f32 %v1576, 1.442695
        %v1587 = vpow.pop %v1586
        %v1588 = vmul.f32 %v1577, 1.442695
        %v1589 = vpow.pop %v1588
        %v1590 = vmul.f32 %v1578, 1.442695
        %v1591 = vpow.pop %v1590
        %v1592 = vmul.f32 %v1579, 1.442695
        %v1593 = vpow.pop %v1592
        %v1594 = vmul.f32 %v1580, 1.442695
        %v1595 = vpow.pop %v1594
        %v1596 = vmul.f32 %v1581, 1.442695
        %v1597 = vpow.pop %v1596
        %v1598 = vmul.f32 %v1583, %v1486
        %v1599 = vmul.f32 %v1585, %v1487
        %v1600 = vmul.f32 %v1587, %v1488
        %v1601 = vmul.f32 %v1589, %v1489
        %v1602 = vmul.f32 %v1591, %v1490
        %v1603 = vmul.f32 %v1593, %v1491
        %v1604 = vmul.f32 %v1595, %v1492
        %v1605 = vmul.f32 %v1597, %v1493
        %1606 = vset.pattern.permute.xlu0 5
        %1607 = vperm.xlu0 %1606, %v593
        %v1608 = vpop.permute.xlu0 %1607
        %1610 = vset.pattern.permute.xlu0 5
        %1611 = vperm.xlu0 %1610, %v598
        %v1612 = vpop.permute.xlu0 %1611
        %1614 = vset.pattern.permute.xlu0 5
        %1615 = vperm.xlu0 %1614, %v603
        %v1616 = vpop.permute.xlu0 %1615
        %1618 = vset.pattern.permute.xlu0 5
        %1619 = vperm.xlu0 %1618, %v608
        %v1620 = vpop.permute.xlu0 %1619
        %1622 = vset.pattern.permute.xlu0 5
        %1623 = vperm.xlu0 %1622, %v613
        %v1624 = vpop.permute.xlu0 %1623
        %1626 = vset.pattern.permute.xlu0 5
        %1627 = vperm.xlu0 %1626, %v618
        %v1628 = vpop.permute.xlu0 %1627
        %1630 = vset.pattern.permute.xlu0 5
        %1631 = vperm.xlu0 %1630, %v623
        %v1632 = vpop.permute.xlu0 %1631
        %1634 = vset.pattern.permute.xlu0 5
        %1635 = vperm.xlu0 %1634, %v628
        %v1636 = vpop.permute.xlu0 %1635
        %v1638 = vlaneseq
        %v1639 = vshrl.u32 %v1638, 7
        %v1640 = vsub.s32 5, %v1639
        %v1641 = vrot.slane %v725, %v1640
        %v1642 = vmul.f32 %v1608, %v1641
        %v1643 = vmul.f32 %v1612, %v1641
        %v1644 = vmul.f32 %v1616, %v1641
        %v1645 = vmul.f32 %v1620, %v1641
        %v1646 = vmul.f32 %v1624, %v1641
        %v1647 = vmul.f32 %v1628, %v1641
        %v1648 = vmul.f32 %v1632, %v1641
        %v1649 = vmul.f32 %v1636, %v1641
        %v1650 = vadd.f32 %v1598, %v1642
        %v1651 = vadd.f32 %v1599, %v1643
        %v1652 = vadd.f32 %v1600, %v1644
        %v1653 = vadd.f32 %v1601, %v1645
        %v1654 = vadd.f32 %v1602, %v1646
        %v1655 = vadd.f32 %v1603, %v1647
        %v1656 = vadd.f32 %v1604, %v1648
        %v1657 = vadd.f32 %v1605, %v1649
        %v1658 = vrot.slane %v714, 5
        %v1659 = vrot.slane %v733, 5
        %v1661 = vsel %vm838, %v1658, 0
        %1663 = vmatprep.subr.mxu0 0.0
        %1664 = vmatpush1.msra.mxu0 0.0
        %1665 = vmatprep.subr.mxu0 0.0
        %1666 = vmatpush1.msra.mxu0 0.0
        %1667 = vmatprep.subr.mxu0 0.0
        %1668 = vmatpush1.msra.mxu0 0.0
        %1669 = vmatprep.subr.mxu0 0.0
        %1670 = vmatpush1.msra.mxu0 0.0
        %1671 = vmatprep.subr.mxu0 0.0
        %1672 = vmatpush1.msra.mxu0 0.0
        %1673 = vmatprep.subr.mxu0 0.0
        %1674 = vmatpush1.msra.mxu0 0.0
        %1675 = vmatprep.subr.mxu0 0.0
        %1676 = vmatpush1.msra.mxu0 0.0
        %1677 = vmatprep.subr.mxu0 0.0
        %1678 = vmatpush1.msra.mxu0 0.0
        %1679 = vmatprep.subr.mxu0 0.0
        %1680 = vmatpush1.msra.mxu0 %v1657
        %1681 = vmatprep.subr.mxu0 0.0
        %1682 = vmatpush1.msra.mxu0 %v1656
        %1683 = vmatprep.subr.mxu0 0.0
        %1684 = vmatpush1.msra.mxu0 %v1655
        %1685 = vmatprep.subr.mxu0 0.0
        %1686 = vmatpush1.msra.mxu0 %v1654
        %1687 = vmatprep.subr.mxu0 0.0
        %1688 = vmatpush1.msra.mxu0 %v1653
        %1689 = vmatprep.subr.mxu0 0.0
        %1690 = vmatpush1.msra.mxu0 %v1652
        %1691 = vmatprep.subr.mxu0 0.0
        %1692 = vmatpush1.msra.mxu0 %v1651
        %1693 = vmatprep.subr.mxu0 0.0
        %1694 = vmatpush1.msra.mxu0 %v1650
        %1695 = vmatprep.subr.mxu0 0.0
        %1696 = vmatpush2.msra.mxu0 0.0
        %1697 = vmatprep.subr.mxu0 0.0
        %1698 = vmatpush2.msra.mxu0 0.0
        %1699 = vmatprep.subr.mxu0 0.0
        %1700 = vmatpush2.msra.mxu0 0.0
        %1701 = vmatprep.subr.mxu0 0.0
        %1702 = vmatpush2.msra.mxu0 0.0
        %1703 = vmatprep.subr.mxu0 0.0
        %1704 = vmatpush2.msra.mxu0 0.0
        %1705 = vmatprep.subr.mxu0 0.0
        %1706 = vmatpush2.msra.mxu0 0.0
        %1707 = vmatprep.subr.mxu0 0.0
        %1708 = vmatpush2.msra.mxu0 0.0
        %1709 = vmatprep.subr.mxu0 0.0
        %1710 = vmatpush2.msra.mxu0 0.0
        %1711 = vmatprep.subr.mxu0 0.0
        %1712 = vmatpush2.msra.mxu0 0.0
        %1713 = vmatprep.subr.mxu0 0.0
        %1714 = vmatpush2.msra.mxu0 0.0
        %1715 = vmatprep.subr.mxu0 0.0
        %1716 = vmatpush2.msra.mxu0 0.0
        %1717 = vmatprep.subr.mxu0 0.0
        %1718 = vmatpush2.msra.mxu0 0.0
        %1719 = vmatprep.subr.mxu0 0.0
        %1720 = vmatpush2.msra.mxu0 0.0
        %1721 = vmatprep.subr.mxu0 0.0
        %1722 = vmatpush2.msra.mxu0 0.0
        %1723 = vmatprep.subr.mxu0 0.0
        %1724 = vmatpush2.msra.mxu0 0.0
        %1725 = vmatprep.subr.mxu0 0.0
        %1726 = vmatpush2.msra.mxu0 0.0
        %1727 = vmatprep.mubr.f32.mxu0 0.0
        %1728 = vmatmul.mubr.f32.gmra.mxu0 %v1661
        %v1729 = vpop.f32.mrf.mxu0
        %v1730 = vadd.f32 %v1659, %v1729
        %v1731 = vpop.f32.mrf.mxu0
        %1732 = vdwg.mxu0
        %1733 = vst [vmem:[%s318 + $0x5] sm:$0x1] %v1730
        %v1734 = vlaneseq
        %v1735 = vshrl.u32 %v1734, 7
        %v1736 = vsub.s32 6, %v1735
        %v1737 = vrot.slane %v517, %v1736
        %v1738 = vmul.f32 %v717, %v1737
        %v1739 = vmul.f32 %v718, %v1737
        %v1740 = vmul.f32 %v719, %v1737
        %v1741 = vmul.f32 %v720, %v1737
        %v1742 = vmul.f32 %v721, %v1737
        %v1743 = vmul.f32 %v722, %v1737
        %v1744 = vmul.f32 %v723, %v1737
        %v1745 = vmul.f32 %v724, %v1737
        %v1746 = vmul.f32 %v1738, 1.442695
        %v1747 = vpow.pop %v1746
        %v1748 = vmul.f32 %v1739, 1.442695
        %v1749 = vpow.pop %v1748
        %v1750 = vmul.f32 %v1740, 1.442695
        %v1751 = vpow.pop %v1750
        %v1752 = vmul.f32 %v1741, 1.442695
        %v1753 = vpow.pop %v1752
        %v1754 = vmul.f32 %v1742, 1.442695
        %v1755 = vpow.pop %v1754
        %v1756 = vmul.f32 %v1743, 1.442695
        %v1757 = vpow.pop %v1756
        %v1758 = vmul.f32 %v1744, 1.442695
        %v1759 = vpow.pop %v1758
        %v1760 = vmul.f32 %v1745, 1.442695
        %v1761 = vpow.pop %v1760
        %v1762 = vmul.f32 %v1747, %v1650
        %v1763 = vmul.f32 %v1749, %v1651
        %v1764 = vmul.f32 %v1751, %v1652
        %v1765 = vmul.f32 %v1753, %v1653
        %v1766 = vmul.f32 %v1755, %v1654
        %v1767 = vmul.f32 %v1757, %v1655
        %v1768 = vmul.f32 %v1759, %v1656
        %v1769 = vmul.f32 %v1761, %v1657
        %1770 = vset.pattern.permute.xlu0 6
        %1771 = vperm.xlu0 %1770, %v593
        %v1772 = vpop.permute.xlu0 %1771
        %1774 = vset.pattern.permute.xlu0 6
        %1775 = vperm.xlu0 %1774, %v598
        %v1776 = vpop.permute.xlu0 %1775
        %1778 = vset.pattern.permute.xlu0 6
        %1779 = vperm.xlu0 %1778, %v603
        %v1780 = vpop.permute.xlu0 %1779
        %1782 = vset.pattern.permute.xlu0 6
        %1783 = vperm.xlu0 %1782, %v608
        %v1784 = vpop.permute.xlu0 %1783
        %1786 = vset.pattern.permute.xlu0 6
        %1787 = vperm.xlu0 %1786, %v613
        %v1788 = vpop.permute.xlu0 %1787
        %1790 = vset.pattern.permute.xlu0 6
        %1791 = vperm.xlu0 %1790, %v618
        %v1792 = vpop.permute.xlu0 %1791
        %1794 = vset.pattern.permute.xlu0 6
        %1795 = vperm.xlu0 %1794, %v623
        %v1796 = vpop.permute.xlu0 %1795
        %1798 = vset.pattern.permute.xlu0 6
        %1799 = vperm.xlu0 %1798, %v628
        %v1800 = vpop.permute.xlu0 %1799
        %v1802 = vlaneseq
        %v1803 = vshrl.u32 %v1802, 7
        %v1804 = vsub.s32 6, %v1803
        %v1805 = vrot.slane %v725, %v1804
        %v1806 = vmul.f32 %v1772, %v1805
        %v1807 = vmul.f32 %v1776, %v1805
        %v1808 = vmul.f32 %v1780, %v1805
        %v1809 = vmul.f32 %v1784, %v1805
        %v1810 = vmul.f32 %v1788, %v1805
        %v1811 = vmul.f32 %v1792, %v1805
        %v1812 = vmul.f32 %v1796, %v1805
        %v1813 = vmul.f32 %v1800, %v1805
        %v1814 = vadd.f32 %v1762, %v1806
        %v1815 = vadd.f32 %v1763, %v1807
        %v1816 = vadd.f32 %v1764, %v1808
        %v1817 = vadd.f32 %v1765, %v1809
        %v1818 = vadd.f32 %v1766, %v1810
        %v1819 = vadd.f32 %v1767, %v1811
        %v1820 = vadd.f32 %v1768, %v1812
        %v1821 = vadd.f32 %v1769, %v1813
        %v1822 = vrot.slane %v714, 6
        %v1823 = vrot.slane %v733, 6
        %v1825 = vsel %vm838, %v1822, 0
        %1827 = vmatprep.subr.mxu0 0.0
        %1828 = vmatpush1.msra.mxu0 0.0
        %1829 = vmatprep.subr.mxu0 0.0
        %1830 = vmatpush1.msra.mxu0 0.0
        %1831 = vmatprep.subr.mxu0 0.0
        %1832 = vmatpush1.msra.mxu0 0.0
        %1833 = vmatprep.subr.mxu0 0.0
        %1834 = vmatpush1.msra.mxu0 0.0
        %1835 = vmatprep.subr.mxu0 0.0
        %1836 = vmatpush1.msra.mxu0 0.0
        %1837 = vmatprep.subr.mxu0 0.0
        %1838 = vmatpush1.msra.mxu0 0.0
        %1839 = vmatprep.subr.mxu0 0.0
        %1840 = vmatpush1.msra.mxu0 0.0
        %1841 = vmatprep.subr.mxu0 0.0
        %1842 = vmatpush1.msra.mxu0 0.0
        %1843 = vmatprep.subr.mxu0 0.0
        %1844 = vmatpush1.msra.mxu0 %v1821
        %1845 = vmatprep.subr.mxu0 0.0
        %1846 = vmatpush1.msra.mxu0 %v1820
        %1847 = vmatprep.subr.mxu0 0.0
        %1848 = vmatpush1.msra.mxu0 %v1819
        %1849 = vmatprep.subr.mxu0 0.0
        %1850 = vmatpush1.msra.mxu0 %v1818
        %1851 = vmatprep.subr.mxu0 0.0
        %1852 = vmatpush1.msra.mxu0 %v1817
        %1853 = vmatprep.subr.mxu0 0.0
        %1854 = vmatpush1.msra.mxu0 %v1816
        %1855 = vmatprep.subr.mxu0 0.0
        %1856 = vmatpush1.msra.mxu0 %v1815
        %1857 = vmatprep.subr.mxu0 0.0
        %1858 = vmatpush1.msra.mxu0 %v1814
        %1859 = vmatprep.subr.mxu0 0.0
        %1860 = vmatpush2.msra.mxu0 0.0
        %1861 = vmatprep.subr.mxu0 0.0
        %1862 = vmatpush2.msra.mxu0 0.0
        %1863 = vmatprep.subr.mxu0 0.0
        %1864 = vmatpush2.msra.mxu0 0.0
        %1865 = vmatprep.subr.mxu0 0.0
        %1866 = vmatpush2.msra.mxu0 0.0
        %1867 = vmatprep.subr.mxu0 0.0
        %1868 = vmatpush2.msra.mxu0 0.0
        %1869 = vmatprep.subr.mxu0 0.0
        %1870 = vmatpush2.msra.mxu0 0.0
        %1871 = vmatprep.subr.mxu0 0.0
        %1872 = vmatpush2.msra.mxu0 0.0
        %1873 = vmatprep.subr.mxu0 0.0
        %1874 = vmatpush2.msra.mxu0 0.0
        %1875 = vmatprep.subr.mxu0 0.0
        %1876 = vmatpush2.msra.mxu0 0.0
        %1877 = vmatprep.subr.mxu0 0.0
        %1878 = vmatpush2.msra.mxu0 0.0
        %1879 = vmatprep.subr.mxu0 0.0
        %1880 = vmatpush2.msra.mxu0 0.0
        %1881 = vmatprep.subr.mxu0 0.0
        %1882 = vmatpush2.msra.mxu0 0.0
        %1883 = vmatprep.subr.mxu0 0.0
        %1884 = vmatpush2.msra.mxu0 0.0
        %1885 = vmatprep.subr.mxu0 0.0
        %1886 = vmatpush2.msra.mxu0 0.0
        %1887 = vmatprep.subr.mxu0 0.0
        %1888 = vmatpush2.msra.mxu0 0.0
        %1889 = vmatprep.subr.mxu0 0.0
        %1890 = vmatpush2.msra.mxu0 0.0
        %1891 = vmatprep.mubr.f32.mxu0 0.0
        %1892 = vmatmul.mubr.f32.gmra.mxu0 %v1825
        %v1893 = vpop.f32.mrf.mxu0
        %v1894 = vadd.f32 %v1823, %v1893
        %v1895 = vpop.f32.mrf.mxu0
        %1896 = vdwg.mxu0
        %1897 = vst [vmem:[%s318 + $0x6] sm:$0x1] %v1894
        %v1898 = vlaneseq
        %v1899 = vshrl.u32 %v1898, 7
        %v1900 = vsub.s32 7, %v1899
        %v1901 = vrot.slane %v517, %v1900
        %v1902 = vmul.f32 %v717, %v1901
        %v1903 = vmul.f32 %v718, %v1901
        %v1904 = vmul.f32 %v719, %v1901
        %v1905 = vmul.f32 %v720, %v1901
        %v1906 = vmul.f32 %v721, %v1901
        %v1907 = vmul.f32 %v722, %v1901
        %v1908 = vmul.f32 %v723, %v1901
        %v1909 = vmul.f32 %v724, %v1901
        %v1910 = vmul.f32 %v1902, 1.442695
        %v1911 = vpow.pop %v1910
        %v1912 = vmul.f32 %v1903, 1.442695
        %v1913 = vpow.pop %v1912
        %v1914 = vmul.f32 %v1904, 1.442695
        %v1915 = vpow.pop %v1914
        %v1916 = vmul.f32 %v1905, 1.442695
        %v1917 = vpow.pop %v1916
        %v1918 = vmul.f32 %v1906, 1.442695
        %v1919 = vpow.pop %v1918
        %v1920 = vmul.f32 %v1907, 1.442695
        %v1921 = vpow.pop %v1920
        %v1922 = vmul.f32 %v1908, 1.442695
        %v1923 = vpow.pop %v1922
        %v1924 = vmul.f32 %v1909, 1.442695
        %v1925 = vpow.pop %v1924
        %v1926 = vmul.f32 %v1911, %v1814
        %v1927 = vmul.f32 %v1913, %v1815
        %v1928 = vmul.f32 %v1915, %v1816
        %v1929 = vmul.f32 %v1917, %v1817
        %v1930 = vmul.f32 %v1919, %v1818
        %v1931 = vmul.f32 %v1921, %v1819
        %v1932 = vmul.f32 %v1923, %v1820
        %v1933 = vmul.f32 %v1925, %v1821
        %1934 = vset.pattern.permute.xlu0 7
        %1935 = vperm.xlu0 %1934, %v593
        %v1936 = vpop.permute.xlu0 %1935
        %1938 = vset.pattern.permute.xlu0 7
        %1939 = vperm.xlu0 %1938, %v598
        %v1940 = vpop.permute.xlu0 %1939
        %1942 = vset.pattern.permute.xlu0 7
        %1943 = vperm.xlu0 %1942, %v603
        %v1944 = vpop.permute.xlu0 %1943
        %1946 = vset.pattern.permute.xlu0 7
        %1947 = vperm.xlu0 %1946, %v608
        %v1948 = vpop.permute.xlu0 %1947
        %1950 = vset.pattern.permute.xlu0 7
        %1951 = vperm.xlu0 %1950, %v613
        %v1952 = vpop.permute.xlu0 %1951
        %1954 = vset.pattern.permute.xlu0 7
        %1955 = vperm.xlu0 %1954, %v618
        %v1956 = vpop.permute.xlu0 %1955
        %1958 = vset.pattern.permute.xlu0 7
        %1959 = vperm.xlu0 %1958, %v623
        %v1960 = vpop.permute.xlu0 %1959
        %1962 = vset.pattern.permute.xlu0 7
        %1963 = vperm.xlu0 %1962, %v628
        %v1964 = vpop.permute.xlu0 %1963
        %v1966 = vlaneseq
        %v1967 = vshrl.u32 %v1966, 7
        %v1968 = vsub.s32 7, %v1967
        %v1969 = vrot.slane %v725, %v1968
        %v1970 = vmul.f32 %v1936, %v1969
        %v1971 = vmul.f32 %v1940, %v1969
        %v1972 = vmul.f32 %v1944, %v1969
        %v1973 = vmul.f32 %v1948, %v1969
        %v1974 = vmul.f32 %v1952, %v1969
        %v1975 = vmul.f32 %v1956, %v1969
        %v1976 = vmul.f32 %v1960, %v1969
        %v1977 = vmul.f32 %v1964, %v1969
        %v1978 = vadd.f32 %v1926, %v1970
        %v1979 = vadd.f32 %v1927, %v1971
        %v1980 = vadd.f32 %v1928, %v1972
        %v1981 = vadd.f32 %v1929, %v1973
        %v1982 = vadd.f32 %v1930, %v1974
        %v1983 = vadd.f32 %v1931, %v1975
        %v1984 = vadd.f32 %v1932, %v1976
        %v1985 = vadd.f32 %v1933, %v1977
        %v1986 = vrot.slane %v714, 7
        %v1987 = vrot.slane %v733, 7
        %v1989 = vsel %vm838, %v1986, 0
        %1991 = vmatprep.subr.mxu0 0.0
        %1992 = vmatpush1.msra.mxu0 0.0
        %1993 = vmatprep.subr.mxu0 0.0
        %1994 = vmatpush1.msra.mxu0 0.0
        %1995 = vmatprep.subr.mxu0 0.0
        %1996 = vmatpush1.msra.mxu0 0.0
        %1997 = vmatprep.subr.mxu0 0.0
        %1998 = vmatpush1.msra.mxu0 0.0
        %1999 = vmatprep.subr.mxu0 0.0
        %2000 = vmatpush1.msra.mxu0 0.0
        %2001 = vmatprep.subr.mxu0 0.0
        %2002 = vmatpush1.msra.mxu0 0.0
        %2003 = vmatprep.subr.mxu0 0.0
        %2004 = vmatpush1.msra.mxu0 0.0
        %2005 = vmatprep.subr.mxu0 0.0
        %2006 = vmatpush1.msra.mxu0 0.0
        %2007 = vmatprep.subr.mxu0 0.0
        %2008 = vmatpush1.msra.mxu0 %v1985
        %2009 = vmatprep.subr.mxu0 0.0
        %2010 = vmatpush1.msra.mxu0 %v1984
        %2011 = vmatprep.subr.mxu0 0.0
        %2012 = vmatpush1.msra.mxu0 %v1983
        %2013 = vmatprep.subr.mxu0 0.0
        %2014 = vmatpush1.msra.mxu0 %v1982
        %2015 = vmatprep.subr.mxu0 0.0
        %2016 = vmatpush1.msra.mxu0 %v1981
        %2017 = vmatprep.subr.mxu0 0.0
        %2018 = vmatpush1.msra.mxu0 %v1980
        %2019 = vmatprep.subr.mxu0 0.0
        %2020 = vmatpush1.msra.mxu0 %v1979
        %2021 = vmatprep.subr.mxu0 0.0
        %2022 = vmatpush1.msra.mxu0 %v1978
        %2023 = vmatprep.subr.mxu0 0.0
        %2024 = vmatpush2.msra.mxu0 0.0
        %2025 = vmatprep.subr.mxu0 0.0
        %2026 = vmatpush2.msra.mxu0 0.0
        %2027 = vmatprep.subr.mxu0 0.0
        %2028 = vmatpush2.msra.mxu0 0.0
        %2029 = vmatprep.subr.mxu0 0.0
        %2030 = vmatpush2.msra.mxu0 0.0
        %2031 = vmatprep.subr.mxu0 0.0
        %2032 = vmatpush2.msra.mxu0 0.0
        %2033 = vmatprep.subr.mxu0 0.0
        %2034 = vmatpush2.msra.mxu0 0.0
        %2035 = vmatprep.subr.mxu0 0.0
        %2036 = vmatpush2.msra.mxu0 0.0
        %2037 = vmatprep.subr.mxu0 0.0
        %2038 = vmatpush2.msra.mxu0 0.0
        %2039 = vmatprep.subr.mxu0 0.0
        %2040 = vmatpush2.msra.mxu0 0.0
        %2041 = vmatprep.subr.mxu0 0.0
        %2042 = vmatpush2.msra.mxu0 0.0
        %2043 = vmatprep.subr.mxu0 0.0
        %2044 = vmatpush2.msra.mxu0 0.0
        %2045 = vmatprep.subr.mxu0 0.0
        %2046 = vmatpush2.msra.mxu0 0.0
        %2047 = vmatprep.subr.mxu0 0.0
        %2048 = vmatpush2.msra.mxu0 0.0
        %2049 = vmatprep.subr.mxu0 0.0
        %2050 = vmatpush2.msra.mxu0 0.0
        %2051 = vmatprep.subr.mxu0 0.0
        %2052 = vmatpush2.msra.mxu0 0.0
        %2053 = vmatprep.subr.mxu0 0.0
        %2054 = vmatpush2.msra.mxu0 0.0
        %2055 = vmatprep.mubr.f32.mxu0 0.0
        %2056 = vmatmul.mubr.f32.gmra.mxu0 %v1989
        %v2057 = vpop.f32.mrf.mxu0
        %v2058 = vadd.f32 %v1987, %v2057
        %v2059 = vpop.f32.mrf.mxu0
        %2060 = vdwg.mxu0
        %2061 = vst [vmem:[%s318 + $0x7] sm:$0x1] %v2058
        %2062 = vst [vmem:[#allocation2] sm:$0xff] %v1978
        %2063 = vst [vmem:[#allocation2 + $0x8] sm:$0xff] %v1979
        %2064 = vst [vmem:[#allocation2 + $0x10] sm:$0xff] %v1980
        %2065 = vst [vmem:[#allocation2 + $0x18] sm:$0xff] %v1981
        %2066 = vst [vmem:[#allocation2 + $0x20] sm:$0xff] %v1982
        %2067 = vst [vmem:[#allocation2 + $0x28] sm:$0xff] %v1983
        %2068 = vst [vmem:[#allocation2 + $0x30] sm:$0xff] %v1984
        %2069 = vst [vmem:[#allocation2 + $0x38] sm:$0xff] %v1985
        %s2070 = sand.u32 %s219, 1
        %s2071 = scalar_lea.sflag [#allocation4], %s2070
        %s2072 = sand.u32 %s219, 1
        %s2073 = smul.addr %s2072, 8
        %s2074 = scalar_lea.vmem [#allocation3], %s2073
        // Predicated region
        $region57: #{tpu_custom_call.1} parent=51 // pred_check
          %p2075 = pneg %p229
        $region58: #{tpu_custom_call.1} parent=51 // pred_check_branch
          %2077 = sbr.rel (%p2075) target = $region60
        $region59: #{tpu_custom_call.1} parent=51 // pred_region
          %s2079 = ssub.s32 128, 128
          %2080 = vsyncadd %s2071, %s2079
          %s2081 = sadd.s32 %s27, %s26
          %s2082 = smul.addr %s2081, 128
          %s2083 = scalar_lea.hbm %s8, %s2082
          %s2085 = sshll.u32 %s2074, 4
          %s2086 = int_to_ptr.vmem [resolvable:$true] %s2085
          %2088 = dma.vmem_to_hbm [thread:$0]  %s2086, 128, %s2083, %s2071
        $region60: #{tpu_custom_call.1} parent=51 // pred_fallthru
          _
      $region52: #{tpu_custom_call.1} parent=5 // pred_fallthru
        _
      %p2089 = scmp.le.s32.totalorder 2, %s17
      // Predicated region
      $region61: #{tpu_custom_call.1} parent=5 // pred_check
        %p2090 = pneg %p2089
      $region62: #{tpu_custom_call.1} parent=5 // pred_check_branch
        %2092 = sbr.rel (%p2090) target = $region64
      $region63: #{tpu_custom_call.1} parent=5 // pred_region
        %s2093 = ssub.s32 %s17, 2
        // Predicated region
        $region65: #{tpu_custom_call.1} parent=63 // pred_check
          %p2094 = pneg %p235
        $region66: #{tpu_custom_call.1} parent=63 // pred_check_branch
          %2096 = sbr.rel (%p2094) target = $region68
        $region67: #{tpu_custom_call.1} parent=63 // pred_region
          %s2097 = sand.u32 %s220, 1
          %s2098 = scalar_lea.sflag [#allocation4], %s2097
          %s2099 = sand.u32 %s220, 1
          %s2100 = smul.addr %s2099, 8
          %s2101 = scalar_lea.vmem [#allocation3], %s2100
          %2102 = dma.done %s2098, 128
        $region68: #{tpu_custom_call.1} parent=63 // pred_fallthru
          _
      $region64: #{tpu_custom_call.1} parent=5 // pred_fallthru
        _
    $region6: #{tpu_custom_call.1} parent=1 // loop_footer
      %s21 = sadd.s32 1, %s17
    $region7: #{tpu_custom_call.1} parent=1 // loop_footer_branch
      %16 = sbr.rel target = $region3
    $region8: #{tpu_custom_call.1} parent=1 // loop_exit
      _
    %2103 = vsyncpa [#allocation4], 1
    %s2104 = scalar_lea.sflag [#allocation4], 1
    %2105 = vsyncpa %s2104, 1

</llo_original>
